<compile_context>
chip_gen: v6e
topology: v6e:2x2x1
jax: 0.10.0
libtpu: 0.0.40
codegen_flags: <defaults>
</compile_context>

<pallas_src>
import functools

import jax
import jax.numpy as jnp
from jax.experimental import pallas as pl
from jax.experimental.pallas import tpu as pltpu


def _round_up(x, m):
    return ((x + m - 1) // m) * m


def _const_in_spec(block_shape, index_map):
    """BlockSpec for an input whose block index never changes: single-buffer it."""
    try:
        return pl.BlockSpec(block_shape, index_map, pipeline_mode=pl.Buffered(1))
    except (TypeError, AttributeError, ValueError):
        # Older JAX without pipeline_mode / Buffered(1): fall back to default buffering.
        return pl.BlockSpec(block_shape, index_map)


# --------------------------------------------------------------------------------------
# Fused path: GEMM + stats + BN apply in ONE kernel, conv output resident in VMEM.
# --------------------------------------------------------------------------------------
def _fused_gemm_bn_kernel(a_ref, w_ref, g_ref, b_ref, o_ref, stats_ref, *,
                          tile_m, n_tiles, m_real, inv_m, eps):
    i = pl.program_id(0)

    @pl.when(i == 0)
    def _():
        stats_ref[...] = jnp.zeros_like(stats_ref)

    # One M-tile of the im2col GEMM (MXU).  Store first, then re-read for the channel
    # sum so the (tile_m, C_pad) dot result is never live across store + reduction
    # (a (512,128) f32 value is the entire 64-vreg register file on v5e).
    r0 = pl.multiple_of(i * tile_m, tile_m)
    o_ref[pl.ds(r0, tile_m), :] = jnp.dot(a_ref[...], w_ref[...],
                                          preferred_element_type=jnp.float32)
    y = o_ref[pl.ds(r0, tile_m), :]
    stats_ref[0:1, :] = stats_ref[0:1, :] + jnp.sum(y, axis=0, keepdims=True)

    # Last M tile: the whole conv output is resident in VMEM -> finish BN here.
    # No y HBM round trip and no second kernel launch.
    @pl.when(i == n_tiles - 1)
    def _():
        mean = stats_ref[0:1, :] * inv_m

        # Two-pass (mean-shifted) variance: numerically safer than E[y^2]-E[y]^2;
        # re-reading the resident output only costs VMEM bandwidth.
        @pl.loop(0, n_tiles)
        def _(t):
            t0 = pl.multiple_of(t * tile_m, tile_m)
            yt = o_ref[pl.ds(t0, tile_m), :]
            rows = jax.lax.broadcasted_iota(jnp.int32, yt.shape, 0) + t0
            d = jnp.where(rows < m_real, yt - mean, 0.0)   # mask zero-padded rows
            stats_ref[1:2, :] = stats_ref[1:2, :] + jnp.sum(d * d, axis=0,
                                                            keepdims=True)

        var = jnp.maximum(stats_ref[1:2, :] * inv_m, 0.0)
        scale = g_ref[...] * jax.lax.rsqrt(var + eps)      # rsqrt -> EUP slot
        shift = b_ref[...] - mean * scale

        # Apply the folded affine in place, tile by tile (bounded vreg live range).
        @pl.loop(0, n_tiles)
        def _(t):
            t0 = pl.multiple_of(t * tile_m, tile_m)
            o_ref[pl.ds(t0, tile_m), :] = o_ref[pl.ds(t0, tile_m), :] * scale + shift


# --------------------------------------------------------------------------------------
# Fallback path (large M): GEMM + per-tile stats (parallel grid), then in-place affine.
# --------------------------------------------------------------------------------------
def _gemm_tile_stats_kernel(a_ref, w_ref, y_ref, st_ref):
    y_ref[...] = jnp.dot(a_ref[...], w_ref[...], preferred_element_type=jnp.float32)
    yv = y_ref[...]   # re-read: bounds the dot-result live range (v5e single vst slot)
    s1 = jnp.sum(yv, axis=0, keepdims=True)
    s2 = jnp.sum(yv * yv, axis=0, keepdims=True)
    st_ref[0] = jnp.concatenate([s1, s2], axis=0)


def _affine_kernel(y_ref, sc_ref, sh_ref, o_ref):
    o_ref[...] = y_ref[...] * sc_ref[...] + sh_ref[...]


# --------------------------------------------------------------------------------------
# Public wrapper: Conv2d(stride, padding) + BatchNorm2d (batch stats).  x is NCHW f32.
# --------------------------------------------------------------------------------------
def conv_block_forward(x, w, b, gamma, beta, *, stride=1, padding=0, eps=1e-5,
                       tile_m=1024, fuse_vmem_budget_bytes=8 << 20):
    N, C_in, H, W = x.shape
    C_out, C_in_w, kh, kw = w.shape
    assert C_in == C_in_w
    s, p = stride, padding
    OH = (H + 2 * p - kh) // s + 1
    OW = (W + 2 * p - kw) // s + 1

    M = N * OH * OW
    K = kh * kw * C_in
    K_pad = _round_up(K, 128)          # lane-dense A / W2
    C_pad = _round_up(C_out, 128)      # lane-dense output -> unmasked full-lane stores
    tile_m = max(8, min(tile_m, _round_up(M, 8)))
    tile_m = _round_up(tile_m, 8)
    M_pad = _round_up(M, tile_m)
    n_tiles = M_pad // tile_m

    # ---- im2col (glue, plain JAX) ----
    x_nhwc = jnp.transpose(x, (0, 2, 3, 1)).astype(jnp.float32)
    x_padded = jnp.pad(x_nhwc, ((0, 0), (p, p), (p, p), (0, 0)))
    patches = []
    for ki in range(kh):
        for kj in range(kw):
            patches.append(
                x_padded[:, ki:ki + s * (OH - 1) + 1:s, kj:kj + s * (OW - 1) + 1:s, :])
    A = jnp.stack(patches, axis=3).reshape(M, K)
    # zero-pad rows/cols: padded rows contribute 0 to the GEMM and to the channel sums.
    A = jnp.pad(A, ((0, M_pad - M), (0, K_pad - K)))

    W2 = jnp.transpose(w, (2, 3, 1, 0)).reshape(K, C_out).astype(jnp.float32)
    W2 = jnp.pad(W2, ((0, K_pad - K), (0, C_pad - C_out)))

    # Conv bias intentionally NOT added (exactly absorbed by the training-mode batch mean).
    del b
    gamma_p = jnp.pad(gamma.astype(jnp.float32).reshape(1, C_out),
                      ((0, 0), (0, C_pad - C_out)))
    beta_p = jnp.pad(beta.astype(jnp.float32).reshape(1, C_out),
                     ((0, 0), (0, C_pad - C_out)))

    cost = pl.CostEstimate(
        flops=2 * M_pad * K_pad * C_pad,
        transcendentals=0,
        bytes_accessed=4 * (M_pad * K_pad + K_pad * C_pad + M_pad * C_pad + 4 * C_pad),
    )

    use_fused = (M_pad * C_pad * 4) <= fuse_vmem_budget_bytes

    if use_fused:
        # ---- single fused kernel: GEMM + stats + BN apply; y never touches HBM ----
        kernel = functools.partial(
            _fused_gemm_bn_kernel, tile_m=tile_m, n_tiles=n_tiles, m_real=M,
            inv_m=1.0 / M, eps=eps)
        y_bn = pl.pallas_call(
            kernel,
            out_shape=jax.ShapeDtypeStruct((M_pad, C_pad), jnp.float32),
            grid=(n_tiles,),
            in_specs=[
                pl.BlockSpec((tile_m, K_pad), lambda i: (i, 0)),
                _const_in_spec((K_pad, C_pad), lambda i: (0, 0)),
                _const_in_spec((1, C_pad), lambda i: (0, 0)),
                _const_in_spec((1, C_pad), lambda i: (0, 0)),
            ],
            # constant block index -> output resident in VMEM, one HBM writeback.
            out_specs=pl.BlockSpec((M_pad, C_pad), lambda i: (0, 0)),
            scratch_shapes=[pltpu.VMEM((2, C_pad), jnp.float32)],
            compiler_params=pltpu.CompilerParams(
                dimension_semantics=("arbitrary",)),   # stats / resident output carry
            cost_estimate=cost,
        )(A, W2, gamma_p, beta_p)
    else:
        # ---- fallback: two kernels; M axis parallel (v7x megacore) ----
        y, tile_stats = pl.pallas_call(
            _gemm_tile_stats_kernel,
            out_shape=(jax.ShapeDtypeStruct((M_pad, C_pad), jnp.float32),
                       jax.ShapeDtypeStruct((n_tiles, 2, C_pad), jnp.float32)),
            grid=(n_tiles,),
            in_specs=[
                pl.BlockSpec((tile_m, K_pad), lambda i: (i, 0)),
                _const_in_spec((K_pad, C_pad), lambda i: (0, 0)),
            ],
            out_specs=(pl.BlockSpec((tile_m, C_pad), lambda i: (i, 0)),
                       pl.BlockSpec((1, 2, C_pad), lambda i: (i, 0, 0))),
            compiler_params=pltpu.CompilerParams(
                dimension_semantics=("parallel",)),
            cost_estimate=cost,
        )(A, W2)

        # tiny reductions / folded affine params in plain JAX (hoisted out of the
        # mem-bound loop; single-pass E[y^2]-E[y]^2 kept here to avoid a 2nd HBM pass)
        stats = jnp.sum(tile_stats, axis=0)                       # (2, C_pad)
        mean = stats[0:1] * (1.0 / M)
        var = jnp.maximum(stats[1:2] * (1.0 / M) - mean * mean, 0.0)
        scale = gamma_p * jax.lax.rsqrt(var + eps)
        shift = beta_p - mean * scale

        y_bn = pl.pallas_call(
            _affine_kernel,
            out_shape=jax.ShapeDtypeStruct((M_pad, C_pad), jnp.float32),
            grid=(n_tiles,),
            in_specs=[
                pl.BlockSpec((tile_m, C_pad), lambda i: (i, 0)),
                _const_in_spec((1, C_pad), lambda i: (0, 0)),
                _const_in_spec((1, C_pad), lambda i: (0, 0)),
            ],
            out_specs=pl.BlockSpec((tile_m, C_pad), lambda i: (i, 0)),
            input_output_aliases={0: 0},   # BN result written in place over y
            compiler_params=pltpu.CompilerParams(
                dimension_semantics=("parallel",)),
        )(y, scale, shift)

    # slice off padding, back to NCHW (layout glue to match PyTorch semantics)
    out = y_bn[:M, :C_out].reshape(N, OH, OW, C_out).transpose(0, 3, 1, 2)
    return out


if __name__ == "__main__":
    # ConvBlock(in_c=4, out_c=8, k=3, s=1, p=1)
    in_c, out_c, k, s, p = 4, 8, 3, 1, 1
    N, H, W = 2, 16, 16
    eps = 1e-5

    key = jax.random.PRNGKey(0)
    kx, kw_, kb, kg, kbe = jax.random.split(key, 5)

    x = jax.random.normal(kx, (N, in_c, H, W), dtype=jnp.float32)
    fan_in = in_c * k * k
    w = jax.random.uniform(kw_, (out_c, in_c, k, k), dtype=jnp.float32,
                           minval=-1.0, maxval=1.0) / jnp.sqrt(fan_in)
    b = jax.random.uniform(kb, (out_c,), dtype=jnp.float32,
                           minval=-1.0, maxval=1.0) / jnp.sqrt(fan_in)
    # BatchNorm affine params (non-trivial so the scale/shift path is exercised).
    gamma = 1.0 + 0.1 * jax.random.normal(kg, (out_c,), dtype=jnp.float32)
    beta = 0.1 * jax.random.normal(kbe, (out_c,), dtype=jnp.float32)

    out = conv_block_forward(x, w, b, gamma, beta, stride=s, padding=p, eps=eps)
    out = jax.block_until_ready(out)

    # reference (plain JAX): conv(+bias) followed by training-mode BatchNorm
    conv_ref = jax.lax.conv_general_dilated(
        x, w, window_strides=(s, s), padding=[(p, p), (p, p)],
        dimension_numbers=("NCHW", "OIHW", "NCHW")) + b.reshape(1, -1, 1, 1)
    mu = conv_ref.mean(axis=(0, 2, 3), keepdims=True)
    var = ((conv_ref - mu) ** 2).mean(axis=(0, 2, 3), keepdims=True)
    ref = (conv_ref - mu) / jnp.sqrt(var + eps) * gamma.reshape(1, -1, 1, 1) \
        + beta.reshape(1, -1, 1, 1)

    assert out.shape == (N, out_c, H, W)
    assert jnp.allclose(out, ref, atol=1e-4, rtol=1e-4)
    print("KERNEL_OK")
</pallas_src>

<mosaic_0001>
module attributes {stable_mosaic.version = 11 : i64} {
  func.func @_fused_gemm_bn_kernel(%arg0: i32, %arg1: memref<512x128xf32, #tpu.memory_space<vmem>>, %arg2: memref<128x128xf32, #tpu.memory_space<vmem>>, %arg3: memref<1x128xf32, #tpu.memory_space<vmem>>, %arg4: memref<1x128xf32, #tpu.memory_space<vmem>>, %arg5: memref<512x128xf32, #tpu.memory_space<vmem>>, %arg6: memref<2x128xf32, #tpu.memory_space<vmem>>) attributes {dimension_semantics = [#tpu.dimension_semantics<arbitrary>], iteration_bounds = array<i64: 1>, scalar_prefetch = 0 : i64, scratch_operands = 1 : i64, tpu.core_type = #tpu.core_type<tc>, window_params = [{transform_indices = @transform_0, window_bounds = array<i64: 512, 128>}, {pipeline_mode = #tpu.pipeline_mode<synchronous>, transform_indices = @transform_1, window_bounds = array<i64: 128, 128>}, {pipeline_mode = #tpu.pipeline_mode<synchronous>, transform_indices = @transform_2, window_bounds = array<i64: 1, 128>}, {pipeline_mode = #tpu.pipeline_mode<synchronous>, transform_indices = @transform_3, window_bounds = array<i64: 1, 128>}, {pipeline_mode = #tpu.pipeline_mode<synchronous>, transform_indices = @transform_4, window_bounds = array<i64: 512, 128>}]} {
    %c0_i32 = arith.constant 0 : i32
    %0 = arith.cmpi eq, %arg0, %c0_i32 : i32
    %1 = arith.extui %0 : i1 to i32
    %c0_i32_0 = arith.constant 0 : i32
    %2 = arith.cmpi ne, %1, %c0_i32_0 : i32
    scf.if %2 {
      %cst_13 = arith.constant 0.000000e+00 : f32
      %20 = vector.broadcast %cst_13 : f32 to vector<2x128xf32>
      %c0_14 = arith.constant 0 : index
      %c0_15 = arith.constant 0 : index
      %21 = vector.load %arg6[%c0_14, %c0_15] : memref<2x128xf32, #tpu.memory_space<vmem>>, vector<2x128xf32>
      tpu.vector_store %arg6[%c0_14, %c0_15], %20 {strides = array<i32>} : memref<2x128xf32, #tpu.memory_space<vmem>>, vector<2x128xf32>,
    } else {
    }
    %c512_i32 = arith.constant 512 : i32
    %3 = arith.muli %arg0, %c512_i32 : i32
    %4 = tpu.assume_multiple %3, 512 : i32
    %c0 = arith.constant 0 : index
    %c0_1 = arith.constant 0 : index
    %5 = vector.load %arg1[%c0, %c0_1] : memref<512x128xf32, #tpu.memory_space<vmem>>, vector<512x128xf32>
    %c0_2 = arith.constant 0 : index
    %c0_3 = arith.constant 0 : index
    %6 = vector.load %arg2[%c0_2, %c0_3] : memref<128x128xf32, #tpu.memory_space<vmem>>, vector<128x128xf32>
    %cst = arith.constant dense<0.000000e+00> : vector<512x128xf32>
    %7 = tpu.matmul %5, %6, %cst {dimension_numbers = #tpu.dot_dimension_numbers<[1], [0], [0], [1], [0, 0, 1, 1], [], []>} : vector<512x128xf32>, vector<128x128xf32>, vector<512x128xf32> -> vector<512x128xf32>
    %8 = arith.index_cast %4 : i32 to index
    %c0_4 = arith.constant 0 : index
    %9 = vector.load %arg5[%8, %c0_4] : memref<512x128xf32, #tpu.memory_space<vmem>>, vector<512x128xf32>
    tpu.vector_store %arg5[%8, %c0_4], %7 {strides = array<i32>} : memref<512x128xf32, #tpu.memory_space<vmem>>, vector<512x128xf32>,
    %10 = arith.index_cast %4 : i32 to index
    %c0_5 = arith.constant 0 : index
    %11 = vector.load %arg5[%10, %c0_5] : memref<512x128xf32, #tpu.memory_space<vmem>>, vector<512x128xf32>
    %c0_6 = arith.constant 0 : index
    %c0_7 = arith.constant 0 : index
    %12 = vector.load %arg6[%c0_6, %c0_7] : memref<2x128xf32, #tpu.memory_space<vmem>>, vector<1x128xf32>
    %cst_8 = arith.constant dense<0.000000e+00> : vector<128xf32>
    %13 = vector.multi_reduction <add>, %11, %cst_8 [0] : vector<512x128xf32> to vector<128xf32>
    %14 = vector.shape_cast %13 : vector<128xf32> to vector<1x128xf32>
    %15 = arith.addf %12, %14 : vector<1x128xf32>
    %c0_9 = arith.constant 0 : index
    %c0_10 = arith.constant 0 : index
    %16 = vector.load %arg6[%c0_9, %c0_10] : memref<2x128xf32, #tpu.memory_space<vmem>>, vector<1x128xf32>
    tpu.vector_store %arg6[%c0_9, %c0_10], %15 {strides = array<i32>} : memref<2x128xf32, #tpu.memory_space<vmem>>, vector<1x128xf32>,
    %c0_i32_11 = arith.constant 0 : i32
    %17 = arith.cmpi eq, %arg0, %c0_i32_11 : i32
    %18 = arith.extui %17 : i1 to i32
    %c0_i32_12 = arith.constant 0 : i32
    %19 = arith.cmpi ne, %18, %c0_i32_12 : i32
    scf.if %19 {
      %c0_13 = arith.constant 0 : index
      %c0_14 = arith.constant 0 : index
      %20 = vector.load %arg6[%c0_13, %c0_14] : memref<2x128xf32, #tpu.memory_space<vmem>>, vector<1x128xf32>
      %cst_15 = arith.constant 0.001953125 : f32
      %21 = vector.broadcast %cst_15 : f32 to vector<1x128xf32>
      %22 = arith.mulf %20, %21 : vector<1x128xf32>
      %c0_i32_16 = arith.constant 0 : i32
      %c1_i32 = arith.constant 1 : i32
      %23 = arith.muli %c0_i32_16, %c1_i32 : i32
      %c0_i32_17 = arith.constant 0 : i32
      %24 = arith.addi %c0_i32_17, %23 : i32
      %c512_i32_18 = arith.constant 512 : i32
      %25 = arith.muli %24, %c512_i32_18 : i32
      %26 = tpu.assume_multiple %25, 512 : i32
      %27 = arith.index_cast %26 : i32 to index
      %c0_19 = arith.constant 0 : index
      %28 = vector.load %arg5[%27, %c0_19] : memref<512x128xf32, #tpu.memory_space<vmem>>, vector<512x128xf32>
      %29 = tpu.iota {dimensions = array<i32: 0>} : vector<512x128xi32>
      %30 = vector.broadcast %26 : i32 to vector<512x128xi32>
      %31 = arith.addi %29, %30 : vector<512x128xi32>
      %c512_i32_20 = arith.constant 512 : i32
      %32 = vector.broadcast %c512_i32_20 : i32 to vector<512x128xi32>
      %33 = arith.cmpi slt, %31, %32 : vector<512x128xi32>
      %34 = vector.broadcast %22 : vector<1x128xf32> to vector<512x128xf32>
      %35 = arith.subf %28, %34 : vector<512x128xf32>
      %cst_21 = arith.constant 0.000000e+00 : f32
      %36 = vector.broadcast %cst_21 : f32 to vector<512x128xf32>
      %37 = arith.select %33, %35, %36 : vector<512x128xi1>, vector<512x128xf32>
      %c1 = arith.constant 1 : index
      %c0_22 = arith.constant 0 : index
      %38 = vector.load %arg6[%c1, %c0_22] : memref<2x128xf32, #tpu.memory_space<vmem>>, vector<1x128xf32>
      %39 = arith.mulf %37, %37 : vector<512x128xf32>
      %cst_23 = arith.constant dense<0.000000e+00> : vector<128xf32>
      %40 = vector.multi_reduction <add>, %39, %cst_23 [0] : vector<512x128xf32> to vector<128xf32>
      %41 = vector.shape_cast %40 : vector<128xf32> to vector<1x128xf32>
      %42 = arith.addf %38, %41 : vector<1x128xf32>
      %c1_24 = arith.constant 1 : index
      %c0_25 = arith.constant 0 : index
      %43 = vector.load %arg6[%c1_24, %c0_25] : memref<2x128xf32, #tpu.memory_space<vmem>>, vector<1x128xf32>
      tpu.vector_store %arg6[%c1_24, %c0_25], %42 {strides = array<i32>} : memref<2x128xf32, #tpu.memory_space<vmem>>, vector<1x128xf32>,
      %c1_i32_26 = arith.constant 1 : i32
      %c1_27 = arith.constant 1 : index
      %c0_28 = arith.constant 0 : index
      %44 = vector.load %arg6[%c1_27, %c0_28] : memref<2x128xf32, #tpu.memory_space<vmem>>, vector<1x128xf32>
      %cst_29 = arith.constant 0.001953125 : f32
      %45 = vector.broadcast %cst_29 : f32 to vector<1x128xf32>
      %46 = arith.mulf %44, %45 : vector<1x128xf32>
      %cst_30 = arith.constant 0.000000e+00 : f32
      %47 = vector.broadcast %cst_30 : f32 to vector<1x128xf32>
      %48 = arith.maximumf %46, %47 : vector<1x128xf32>
      %c0_31 = arith.constant 0 : index
      %c0_32 = arith.constant 0 : index
      %49 = vector.load %arg3[%c0_31, %c0_32] : memref<1x128xf32, #tpu.memory_space<vmem>>, vector<1x128xf32>
      %cst_33 = arith.constant 9.99999974E-6 : f32
      %50 = vector.broadcast %cst_33 : f32 to vector<1x128xf32>
      %51 = arith.addf %48, %50 : vector<1x128xf32>
      %52 = math.rsqrt %51 : vector<1x128xf32>
      %53 = arith.mulf %49, %52 : vector<1x128xf32>
      %c0_34 = arith.constant 0 : index
      %c0_35 = arith.constant 0 : index
      %54 = vector.load %arg4[%c0_34, %c0_35] : memref<1x128xf32, #tpu.memory_space<vmem>>, vector<1x128xf32>
      %55 = arith.mulf %22, %53 : vector<1x128xf32>
      %56 = arith.subf %54, %55 : vector<1x128xf32>
      %c0_i32_36 = arith.constant 0 : i32
      %c1_i32_37 = arith.constant 1 : i32
      %57 = arith.muli %c0_i32_36, %c1_i32_37 : i32
      %c0_i32_38 = arith.constant 0 : i32
      %58 = arith.addi %c0_i32_38, %57 : i32
      %c512_i32_39 = arith.constant 512 : i32
      %59 = arith.muli %58, %c512_i32_39 : i32
      %60 = tpu.assume_multiple %59, 512 : i32
      %61 = arith.index_cast %60 : i32 to index
      %c0_40 = arith.constant 0 : index
      %62 = vector.load %arg5[%61, %c0_40] : memref<512x128xf32, #tpu.memory_space<vmem>>, vector<512x128xf32>
      %63 = vector.broadcast %53 : vector<1x128xf32> to vector<512x128xf32>
      %64 = arith.mulf %62, %63 : vector<512x128xf32>
      %65 = vector.broadcast %56 : vector<1x128xf32> to vector<512x128xf32>
      %66 = arith.addf %64, %65 : vector<512x128xf32>
      %67 = arith.index_cast %60 : i32 to index
      %c0_41 = arith.constant 0 : index
      %68 = vector.load %arg5[%67, %c0_41] : memref<512x128xf32, #tpu.memory_space<vmem>>, vector<512x128xf32>
      tpu.vector_store %arg5[%67, %c0_41], %66 {strides = array<i32>} : memref<512x128xf32, #tpu.memory_space<vmem>>, vector<512x128xf32>,
      %c1_i32_42 = arith.constant 1 : i32
    } else {
    }
    return
  }
  func.func @transform_0(%arg0: i32) -> (i32, i32) {
    %c0_i32 = arith.constant 0 : i32
    %c0_i32_0 = arith.constant 0 : i32
    return %arg0, %c0_i32 : i32, i32
  }
  func.func @transform_1(%arg0: i32) -> (i32, i32) {
    %c0_i32 = arith.constant 0 : i32
    %c0_i32_0 = arith.constant 0 : i32
    %c0_i32_1 = arith.constant 0 : i32
    return %c0_i32, %c0_i32_0 : i32, i32
  }
  func.func @transform_2(%arg0: i32) -> (i32, i32) {
    %c0_i32 = arith.constant 0 : i32
    %c0_i32_0 = arith.constant 0 : i32
    %c0_i32_1 = arith.constant 0 : i32
    return %c0_i32, %c0_i32_0 : i32, i32
  }
  func.func @transform_3(%arg0: i32) -> (i32, i32) {
    %c0_i32 = arith.constant 0 : i32
    %c0_i32_0 = arith.constant 0 : i32
    %c0_i32_1 = arith.constant 0 : i32
    return %c0_i32, %c0_i32_0 : i32, i32
  }
  func.func @transform_4(%arg0: i32) -> (i32, i32) {
    %c0_i32 = arith.constant 0 : i32
    %c0_i32_0 = arith.constant 0 : i32
    %c0_i32_1 = arith.constant 0 : i32
    return %c0_i32, %c0_i32_0 : i32, i32
  }
}

</mosaic_0001>

<llo_original>
// kernel: tpu_custom_call.1
$region0: #{tpu_custom_call.1}
  #allocation0 [shape = 'u32[]', space=smem, size = 0x4, offset = 0x4, fixed_abs, tag = 'smem constant byte address 0x4 - core index']
  #allocation1 [shape = 'u32[144,128]{1,0:T(1,128)}', space=vmem, size = 0x12000, scoped, tag = 'internal scratch']
  #allocation2 [shape = 'f32[2,128]{1,0:T(2,128)}', space=vmem, size = 0x400, scoped, tag = 'scratch operand']
  %s0 = inlined_call_operand.hbm [shape: f32[512,128], index: 0, kind: input, shape index: {}]
  %s1 = inlined_call_operand.hbm [shape: f32[128,128], index: 1, kind: input, shape index: {}]
  %s2 = inlined_call_operand.vmem [shape: f32[1,128], index: 2, kind: input, shape index: {}]
  %s3 = inlined_call_operand.vmem [shape: f32[1,128], index: 3, kind: input, shape index: {}]
  %s4 = inlined_call_operand.hbm [shape: f32[512,128], index: 4, kind: output, shape index: {}]
  %s5 = sld [smem:[#allocation0]]
  $region42: #{tpu_custom_call.1} parent=0
    _
  %s7 = ssub.s32 1, %s5
  %s8 = scalar_select 0, %s7, %s5
  $region1: #{tpu_custom_call.1} parent=0
    #allocation3 [shape = 'u8[262144]{0}', space=vmem, size = 0x40000, scoped, tag = 'input window, operand 0, single buffered']
    #allocation4 [shape = 's32[1]{0}', space=sflag, size = 0x4, scoped, tag = 'scoped memory for tpu_custom_call.1']
    #allocation5 [shape = 's32[1]{0}', space=sflag, size = 0x4, scoped, tag = 'scoped memory for tpu_custom_call.1']
    #allocation6 [shape = 'u8[65536]{0}', space=vmem, size = 0x10000, scoped, tag = 'input window, operand 1, single buffered']
    #allocation7 [shape = 's32[1]{0}', space=sflag, size = 0x4, scoped, tag = 'scoped memory for tpu_custom_call.1']
    #allocation8 [shape = 'u8[262144]{0}', space=vmem, size = 0x40000, scoped, tag = 'output window, operand 0, single buffered']
    %9 = vsyncpa [#allocation4], 0
    %10 = vsyncpa [#allocation7], 0
    %11 = vsyncpa [#allocation5], 0
    // Predicated region
    $region2: #{tpu_custom_call.1} parent=1 // pred_check
      _
    $region3: #{tpu_custom_call.1} parent=1 // pred_check_branch
      %13 = sbr.rel (0) target = $region5
    $region4: #{tpu_custom_call.1} parent=1 // pred_region
      %s15 = ssub.s32 8192, 8192
      %16 = vsyncadd [#allocation4], %s15
      %s17 = sshll.u32 [#allocation3], 4
      %s18 = int_to_ptr.vmem [resolvable:$true] %s17
      %23 = dma.hbm_to_vmem [thread:$0]  %s0, 8192, %s18, [#allocation4], 128, 128, 8
    $region5: #{tpu_custom_call.1} parent=1 // pred_fallthru
      _
    // Predicated region
    $region6: #{tpu_custom_call.1} parent=1 // pred_check
      _
    $region7: #{tpu_custom_call.1} parent=1 // pred_check_branch
      %25 = sbr.rel (0) target = $region9
    $region8: #{tpu_custom_call.1} parent=1 // pred_region
      %s27 = ssub.s32 2048, 2048
      %28 = vsyncadd [#allocation7], %s27
      %s29 = sshll.u32 [#allocation6], 4
      %s30 = int_to_ptr.vmem [resolvable:$true] %s29
      %35 = dma.hbm_to_vmem [thread:$0]  %s1, 2048, %s30, [#allocation7], 128, 128, 8
    $region9: #{tpu_custom_call.1} parent=1 // pred_fallthru
      _
    // Predicated region
    $region10: #{tpu_custom_call.1} parent=1 // pred_check
      _
    $region11: #{tpu_custom_call.1} parent=1 // pred_check_branch
      %37 = sbr.rel (0) target = $region13
    $region12: #{tpu_custom_call.1} parent=1 // pred_region
      _
    $region13: #{tpu_custom_call.1} parent=1 // pred_fallthru
      _
    // Predicated region
    $region14: #{tpu_custom_call.1} parent=1 // pred_check
      _
    $region15: #{tpu_custom_call.1} parent=1 // pred_check_branch
      %39 = sbr.rel (0) target = $region17
    $region16: #{tpu_custom_call.1} parent=1 // pred_region
      _
    $region17: #{tpu_custom_call.1} parent=1 // pred_fallthru
      _
    // Predicated region
    $region18: #{tpu_custom_call.1} parent=1 // pred_check
      _
    $region19: #{tpu_custom_call.1} parent=1 // pred_check_branch
      %41 = sbr.rel (0) target = $region21
    $region20: #{tpu_custom_call.1} parent=1 // pred_region
      %42 = dma.done [#allocation4], 8192
    $region21: #{tpu_custom_call.1} parent=1 // pred_fallthru
      _
    // Predicated region
    $region22: #{tpu_custom_call.1} parent=1 // pred_check
      _
    $region23: #{tpu_custom_call.1} parent=1 // pred_check_branch
      %44 = sbr.rel (0) target = $region25
    $region24: #{tpu_custom_call.1} parent=1 // pred_region
      %45 = dma.done [#allocation7], 2048
    $region25: #{tpu_custom_call.1} parent=1 // pred_fallthru
      _
    %p46 = scmp.eq.s32.totalorder 0, 0
    // Predicated region
    $region26: #{tpu_custom_call.1} parent=1 // pred_check
      %p47 = pneg %p46
    $region27: #{tpu_custom_call.1} parent=1 // pred_check_branch
      %49 = sbr.rel (%p47) target = $region29
    $region28: #{tpu_custom_call.1} parent=1 // pred_region
      %50 = vst [vmem:[#allocation2] sm:$0x3] 0.0
    $region29: #{tpu_custom_call.1} parent=1 // pred_fallthru
      _
    %s51 = smul.u32 0, 512
    %v52 = vld [vmem:[#allocation3] sm:$0xff]
    %v53 = vld [vmem:[#allocation3 + $0x8] sm:$0xff]
    %v54 = vld [vmem:[#allocation3 + $0x10] sm:$0xff]
    %v55 = vld [vmem:[#allocation3 + $0x18] sm:$0xff]
    %v56 = vld [vmem:[#allocation3 + $0x20] sm:$0xff]
    %v57 = vld [vmem:[#allocation3 + $0x28] sm:$0xff]
    %v58 = vld [vmem:[#allocation3 + $0x30] sm:$0xff]
    %v59 = vld [vmem:[#allocation3 + $0x38] sm:$0xff]
    %v60 = vld [vmem:[#allocation3 + $0x40] sm:$0xff]
    %v61 = vld [vmem:[#allocation3 + $0x48] sm:$0xff]
    %v62 = vld [vmem:[#allocation3 + $0x50] sm:$0xff]
    %v63 = vld [vmem:[#allocation3 + $0x58] sm:$0xff]
    %v64 = vld [vmem:[#allocation3 + $0x60] sm:$0xff]
    %v65 = vld [vmem:[#allocation3 + $0x68] sm:$0xff]
    %v66 = vld [vmem:[#allocation3 + $0x70] sm:$0xff]
    %v67 = vld [vmem:[#allocation3 + $0x78] sm:$0xff]
    %v68 = vld [vmem:[#allocation3 + $0x80] sm:$0xff]
    %v69 = vld [vmem:[#allocation3 + $0x88] sm:$0xff]
    %v70 = vld [vmem:[#allocation3 + $0x90] sm:$0xff]
    %v71 = vld [vmem:[#allocation3 + $0x98] sm:$0xff]
    %v72 = vld [vmem:[#allocation3 + $0xa0] sm:$0xff]
    %v73 = vld [vmem:[#allocation3 + $0xa8] sm:$0xff]
    %v74 = vld [vmem:[#allocation3 + $0xb0] sm:$0xff]
    %v75 = vld [vmem:[#allocation3 + $0xb8] sm:$0xff]
    %v76 = vld [vmem:[#allocation3 + $0xc0] sm:$0xff]
    %v77 = vld [vmem:[#allocation3 + $0xc8] sm:$0xff]
    %v78 = vld [vmem:[#allocation3 + $0xd0] sm:$0xff]
    %v79 = vld [vmem:[#allocation3 + $0xd8] sm:$0xff]
    %v80 = vld [vmem:[#allocation3 + $0xe0] sm:$0xff]
    %v81 = vld [vmem:[#allocation3 + $0xe8] sm:$0xff]
    %v82 = vld [vmem:[#allocation3 + $0xf0] sm:$0xff]
    %v83 = vld [vmem:[#allocation3 + $0xf8] sm:$0xff]
    %v84 = vld [vmem:[#allocation3 + $0x100] sm:$0xff]
    %v85 = vld [vmem:[#allocation3 + $0x108] sm:$0xff]
    %v86 = vld [vmem:[#allocation3 + $0x110] sm:$0xff]
    %v87 = vld [vmem:[#allocation3 + $0x118] sm:$0xff]
    %v88 = vld [vmem:[#allocation3 + $0x120] sm:$0xff]
    %v89 = vld [vmem:[#allocation3 + $0x128] sm:$0xff]
    %v90 = vld [vmem:[#allocation3 + $0x130] sm:$0xff]
    %v91 = vld [vmem:[#allocation3 + $0x138] sm:$0xff]
    %v92 = vld [vmem:[#allocation3 + $0x140] sm:$0xff]
    %v93 = vld [vmem:[#allocation3 + $0x148] sm:$0xff]
    %v94 = vld [vmem:[#allocation3 + $0x150] sm:$0xff]
    %v95 = vld [vmem:[#allocation3 + $0x158] sm:$0xff]
    %v96 = vld [vmem:[#allocation3 + $0x160] sm:$0xff]
    %v97 = vld [vmem:[#allocation3 + $0x168] sm:$0xff]
    %v98 = vld [vmem:[#allocation3 + $0x170] sm:$0xff]
    %v99 = vld [vmem:[#allocation3 + $0x178] sm:$0xff]
    %v100 = vld [vmem:[#allocation3 + $0x180] sm:$0xff]
    %v101 = vld [vmem:[#allocation3 + $0x188] sm:$0xff]
    %v102 = vld [vmem:[#allocation3 + $0x190] sm:$0xff]
    %v103 = vld [vmem:[#allocation3 + $0x198] sm:$0xff]
    %v104 = vld [vmem:[#allocation3 + $0x1a0] sm:$0xff]
    %v105 = vld [vmem:[#allocation3 + $0x1a8] sm:$0xff]
    %v106 = vld [vmem:[#allocation3 + $0x1b0] sm:$0xff]
    %v107 = vld [vmem:[#allocation3 + $0x1b8] sm:$0xff]
    %v108 = vld [vmem:[#allocation3 + $0x1c0] sm:$0xff]
    %v109 = vld [vmem:[#allocation3 + $0x1c8] sm:$0xff]
    %v110 = vld [vmem:[#allocation3 + $0x1d0] sm:$0xff]
    %v111 = vld [vmem:[#allocation3 + $0x1d8] sm:$0xff]
    %v112 = vld [vmem:[#allocation3 + $0x1e0] sm:$0xff]
    %v113 = vld [vmem:[#allocation3 + $0x1e8] sm:$0xff]
    %v114 = vld [vmem:[#allocation3 + $0x1f0] sm:$0xff]
    %v115 = vld [vmem:[#allocation3 + $0x1f8] sm:$0xff]
    %v116 = vld [vmem:[#allocation6] sm:$0xff]
    %v117 = vld [vmem:[#allocation6 + $0x8] sm:$0xff]
    %v118 = vld [vmem:[#allocation6 + $0x10] sm:$0xff]
    %v119 = vld [vmem:[#allocation6 + $0x18] sm:$0xff]
    %v120 = vld [vmem:[#allocation6 + $0x20] sm:$0xff]
    %v121 = vld [vmem:[#allocation6 + $0x28] sm:$0xff]
    %v122 = vld [vmem:[#allocation6 + $0x30] sm:$0xff]
    %v123 = vld [vmem:[#allocation6 + $0x38] sm:$0xff]
    %v124 = vld [vmem:[#allocation6 + $0x40] sm:$0xff]
    %v125 = vld [vmem:[#allocation6 + $0x48] sm:$0xff]
    %v126 = vld [vmem:[#allocation6 + $0x50] sm:$0xff]
    %v127 = vld [vmem:[#allocation6 + $0x58] sm:$0xff]
    %v128 = vld [vmem:[#allocation6 + $0x60] sm:$0xff]
    %v129 = vld [vmem:[#allocation6 + $0x68] sm:$0xff]
    %v130 = vld [vmem:[#allocation6 + $0x70] sm:$0xff]
    %v131 = vld [vmem:[#allocation6 + $0x78] sm:$0xff]
    %132 = vmatprep.subr.mxu0 0.0
    %133 = vmatpush1.msra.mxu0 %v131
    %134 = vmatprep.subr.mxu0 0.0
    %135 = vmatpush1.msra.mxu0 %v130
    %136 = vmatprep.subr.mxu0 0.0
    %137 = vmatpush1.msra.mxu0 %v129
    %138 = vmatprep.subr.mxu0 0.0
    %139 = vmatpush1.msra.mxu0 %v128
    %140 = vmatprep.subr.mxu0 0.0
    %141 = vmatpush1.msra.mxu0 %v127
    %142 = vmatprep.subr.mxu0 0.0
    %143 = vmatpush1.msra.mxu0 %v126
    %144 = vmatprep.subr.mxu0 0.0
    %145 = vmatpush1.msra.mxu0 %v125
    %146 = vmatprep.subr.mxu0 0.0
    %147 = vmatpush1.msra.mxu0 %v124
    %148 = vmatprep.subr.mxu0 0.0
    %149 = vmatpush1.msra.mxu0 %v123
    %150 = vmatprep.subr.mxu0 0.0
    %151 = vmatpush1.msra.mxu0 %v122
    %152 = vmatprep.subr.mxu0 0.0
    %153 = vmatpush1.msra.mxu0 %v121
    %154 = vmatprep.subr.mxu0 0.0
    %155 = vmatpush1.msra.mxu0 %v120
    %156 = vmatprep.subr.mxu0 0.0
    %157 = vmatpush1.msra.mxu0 %v119
    %158 = vmatprep.subr.mxu0 0.0
    %159 = vmatpush1.msra.mxu0 %v118
    %160 = vmatprep.subr.mxu0 0.0
    %161 = vmatpush1.msra.mxu0 %v117
    %162 = vmatprep.subr.mxu0 0.0
    %163 = vmatpush1.msra.mxu0 %v116
    %164 = vmatprep.subr.mxu0 0.0
    %165 = vmatpush2.msra.mxu0 0.0
    %166 = vmatprep.subr.mxu0 0.0
    %167 = vmatpush2.msra.mxu0 0.0
    %168 = vmatprep.subr.mxu0 0.0
    %169 = vmatpush2.msra.mxu0 0.0
    %170 = vmatprep.subr.mxu0 0.0
    %171 = vmatpush2.msra.mxu0 0.0
    %172 = vmatprep.subr.mxu0 0.0
    %173 = vmatpush2.msra.mxu0 0.0
    %174 = vmatprep.subr.mxu0 0.0
    %175 = vmatpush2.msra.mxu0 0.0
    %176 = vmatprep.subr.mxu0 0.0
    %177 = vmatpush2.msra.mxu0 0.0
    %178 = vmatprep.subr.mxu0 0.0
    %179 = vmatpush2.msra.mxu0 0.0
    %180 = vmatprep.subr.mxu0 0.0
    %181 = vmatpush2.msra.mxu0 0.0
    %182 = vmatprep.subr.mxu0 0.0
    %183 = vmatpush2.msra.mxu0 0.0
    %184 = vmatprep.subr.mxu0 0.0
    %185 = vmatpush2.msra.mxu0 0.0
    %186 = vmatprep.subr.mxu0 0.0
    %187 = vmatpush2.msra.mxu0 0.0
    %188 = vmatprep.subr.mxu0 0.0
    %189 = vmatpush2.msra.mxu0 0.0
    %190 = vmatprep.subr.mxu0 0.0
    %191 = vmatpush2.msra.mxu0 0.0
    %192 = vmatprep.subr.mxu0 0.0
    %193 = vmatpush2.msra.mxu0 0.0
    %194 = vmatprep.subr.mxu0 0.0
    %195 = vmatpush2.msra.mxu0 0.0
    %196 = vmatprep.mubr.f32.mxu0 0.0
    %197 = vmatmul.mubr.f32.gmra.mxu0 %v52
    %v198 = vpop.f32.mrf.mxu0
    %v199 = vadd.f32 0.0, %v198
    %v200 = vpop.f32.mrf.mxu0
    %201 = vmatprep.mubr.f32.mxu0 0.0
    %202 = vmatmul.mubr.f32.gmra.mxu0 %v53
    %v203 = vpop.f32.mrf.mxu0
    %v204 = vadd.f32 0.0, %v203
    %v205 = vpop.f32.mrf.mxu0
    %206 = vmatprep.mubr.f32.mxu0 0.0
    %207 = vmatmul.mubr.f32.gmra.mxu0 %v54
    %v208 = vpop.f32.mrf.mxu0
    %v209 = vadd.f32 0.0, %v208
    %v210 = vpop.f32.mrf.mxu0
    %211 = vmatprep.mubr.f32.mxu0 0.0
    %212 = vmatmul.mubr.f32.gmra.mxu0 %v55
    %v213 = vpop.f32.mrf.mxu0
    %v214 = vadd.f32 0.0, %v213
    %v215 = vpop.f32.mrf.mxu0
    %216 = vmatprep.mubr.f32.mxu0 0.0
    %217 = vmatmul.mubr.f32.gmra.mxu0 %v56
    %v218 = vpop.f32.mrf.mxu0
    %v219 = vadd.f32 0.0, %v218
    %v220 = vpop.f32.mrf.mxu0
    %221 = vmatprep.mubr.f32.mxu0 0.0
    %222 = vmatmul.mubr.f32.gmra.mxu0 %v57
    %v223 = vpop.f32.mrf.mxu0
    %v224 = vadd.f32 0.0, %v223
    %v225 = vpop.f32.mrf.mxu0
    %226 = vmatprep.mubr.f32.mxu0 0.0
    %227 = vmatmul.mubr.f32.gmra.mxu0 %v58
    %v228 = vpop.f32.mrf.mxu0
    %v229 = vadd.f32 0.0, %v228
    %v230 = vpop.f32.mrf.mxu0
    %231 = vmatprep.mubr.f32.mxu0 0.0
    %232 = vmatmul.mubr.f32.gmra.mxu0 %v59
    %v233 = vpop.f32.mrf.mxu0
    %v234 = vadd.f32 0.0, %v233
    %v235 = vpop.f32.mrf.mxu0
    %236 = vmatprep.mubr.f32.mxu0 0.0
    %237 = vmatmul.mubr.f32.gmra.mxu0 %v60
    %v238 = vpop.f32.mrf.mxu0
    %v239 = vadd.f32 0.0, %v238
    %v240 = vpop.f32.mrf.mxu0
    %241 = vmatprep.mubr.f32.mxu0 0.0
    %242 = vmatmul.mubr.f32.gmra.mxu0 %v61
    %v243 = vpop.f32.mrf.mxu0
    %v244 = vadd.f32 0.0, %v243
    %v245 = vpop.f32.mrf.mxu0
    %246 = vmatprep.mubr.f32.mxu0 0.0
    %247 = vmatmul.mubr.f32.gmra.mxu0 %v62
    %v248 = vpop.f32.mrf.mxu0
    %v249 = vadd.f32 0.0, %v248
    %v250 = vpop.f32.mrf.mxu0
    %251 = vmatprep.mubr.f32.mxu0 0.0
    %252 = vmatmul.mubr.f32.gmra.mxu0 %v63
    %v253 = vpop.f32.mrf.mxu0
    %v254 = vadd.f32 0.0, %v253
    %v255 = vpop.f32.mrf.mxu0
    %256 = vmatprep.mubr.f32.mxu0 0.0
    %257 = vmatmul.mubr.f32.gmra.mxu0 %v64
    %v258 = vpop.f32.mrf.mxu0
    %v259 = vadd.f32 0.0, %v258
    %v260 = vpop.f32.mrf.mxu0
    %261 = vmatprep.mubr.f32.mxu0 0.0
    %262 = vmatmul.mubr.f32.gmra.mxu0 %v65
    %v263 = vpop.f32.mrf.mxu0
    %v264 = vadd.f32 0.0, %v263
    %v265 = vpop.f32.mrf.mxu0
    %266 = vmatprep.mubr.f32.mxu0 0.0
    %267 = vmatmul.mubr.f32.gmra.mxu0 %v66
    %v268 = vpop.f32.mrf.mxu0
    %v269 = vadd.f32 0.0, %v268
    %v270 = vpop.f32.mrf.mxu0
    %271 = vmatprep.mubr.f32.mxu0 0.0
    %272 = vmatmul.mubr.f32.gmra.mxu0 %v67
    %v273 = vpop.f32.mrf.mxu0
    %v274 = vadd.f32 0.0, %v273
    %v275 = vpop.f32.mrf.mxu0
    %276 = vmatprep.mubr.f32.mxu0 0.0
    %277 = vmatmul.mubr.f32.gmra.mxu0 %v68
    %v278 = vpop.f32.mrf.mxu0
    %v279 = vadd.f32 0.0, %v278
    %v280 = vpop.f32.mrf.mxu0
    %281 = vmatprep.mubr.f32.mxu0 0.0
    %282 = vmatmul.mubr.f32.gmra.mxu0 %v69
    %v283 = vpop.f32.mrf.mxu0
    %v284 = vadd.f32 0.0, %v283
    %v285 = vpop.f32.mrf.mxu0
    %286 = vmatprep.mubr.f32.mxu0 0.0
    %287 = vmatmul.mubr.f32.gmra.mxu0 %v70
    %v288 = vpop.f32.mrf.mxu0
    %v289 = vadd.f32 0.0, %v288
    %v290 = vpop.f32.mrf.mxu0
    %291 = vmatprep.mubr.f32.mxu0 0.0
    %292 = vmatmul.mubr.f32.gmra.mxu0 %v71
    %v293 = vpop.f32.mrf.mxu0
    %v294 = vadd.f32 0.0, %v293
    %v295 = vpop.f32.mrf.mxu0
    %296 = vmatprep.mubr.f32.mxu0 0.0
    %297 = vmatmul.mubr.f32.gmra.mxu0 %v72
    %v298 = vpop.f32.mrf.mxu0
    %v299 = vadd.f32 0.0, %v298
    %v300 = vpop.f32.mrf.mxu0
    %301 = vmatprep.mubr.f32.mxu0 0.0
    %302 = vmatmul.mubr.f32.gmra.mxu0 %v73
    %v303 = vpop.f32.mrf.mxu0
    %v304 = vadd.f32 0.0, %v303
    %v305 = vpop.f32.mrf.mxu0
    %306 = vmatprep.mubr.f32.mxu0 0.0
    %307 = vmatmul.mubr.f32.gmra.mxu0 %v74
    %v308 = vpop.f32.mrf.mxu0
    %v309 = vadd.f32 0.0, %v308
    %v310 = vpop.f32.mrf.mxu0
    %311 = vmatprep.mubr.f32.mxu0 0.0
    %312 = vmatmul.mubr.f32.gmra.mxu0 %v75
    %v313 = vpop.f32.mrf.mxu0
    %v314 = vadd.f32 0.0, %v313
    %v315 = vpop.f32.mrf.mxu0
    %316 = vmatprep.mubr.f32.mxu0 0.0
    %317 = vmatmul.mubr.f32.gmra.mxu0 %v76
    %v318 = vpop.f32.mrf.mxu0
    %v319 = vadd.f32 0.0, %v318
    %v320 = vpop.f32.mrf.mxu0
    %321 = vmatprep.mubr.f32.mxu0 0.0
    %322 = vmatmul.mubr.f32.gmra.mxu0 %v77
    %v323 = vpop.f32.mrf.mxu0
    %v324 = vadd.f32 0.0, %v323
    %v325 = vpop.f32.mrf.mxu0
    %326 = vmatprep.mubr.f32.mxu0 0.0
    %327 = vmatmul.mubr.f32.gmra.mxu0 %v78
    %v328 = vpop.f32.mrf.mxu0
    %v329 = vadd.f32 0.0, %v328
    %v330 = vpop.f32.mrf.mxu0
    %331 = vmatprep.mubr.f32.mxu0 0.0
    %332 = vmatmul.mubr.f32.gmra.mxu0 %v79
    %v333 = vpop.f32.mrf.mxu0
    %v334 = vadd.f32 0.0, %v333
    %v335 = vpop.f32.mrf.mxu0
    %336 = vmatprep.mubr.f32.mxu0 0.0
    %337 = vmatmul.mubr.f32.gmra.mxu0 %v80
    %v338 = vpop.f32.mrf.mxu0
    %v339 = vadd.f32 0.0, %v338
    %v340 = vpop.f32.mrf.mxu0
    %341 = vmatprep.mubr.f32.mxu0 0.0
    %342 = vmatmul.mubr.f32.gmra.mxu0 %v81
    %v343 = vpop.f32.mrf.mxu0
    %v344 = vadd.f32 0.0, %v343
    %v345 = vpop.f32.mrf.mxu0
    %346 = vmatprep.mubr.f32.mxu0 0.0
    %347 = vmatmul.mubr.f32.gmra.mxu0 %v82
    %v348 = vpop.f32.mrf.mxu0
    %v349 = vadd.f32 0.0, %v348
    %v350 = vpop.f32.mrf.mxu0
    %351 = vmatprep.mubr.f32.mxu0 0.0
    %352 = vmatmul.mubr.f32.gmra.mxu0 %v83
    %v353 = vpop.f32.mrf.mxu0
    %v354 = vadd.f32 0.0, %v353
    %v355 = vpop.f32.mrf.mxu0
    %356 = vmatprep.mubr.f32.mxu0 0.0
    %357 = vmatmul.mubr.f32.gmra.mxu0 %v84
    %v358 = vpop.f32.mrf.mxu0
    %v359 = vadd.f32 0.0, %v358
    %v360 = vpop.f32.mrf.mxu0
    %361 = vmatprep.mubr.f32.mxu0 0.0
    %362 = vmatmul.mubr.f32.gmra.mxu0 %v85
    %v363 = vpop.f32.mrf.mxu0
    %v364 = vadd.f32 0.0, %v363
    %v365 = vpop.f32.mrf.mxu0
    %366 = vmatprep.mubr.f32.mxu0 0.0
    %367 = vmatmul.mubr.f32.gmra.mxu0 %v86
    %v368 = vpop.f32.mrf.mxu0
    %v369 = vadd.f32 0.0, %v368
    %v370 = vpop.f32.mrf.mxu0
    %371 = vmatprep.mubr.f32.mxu0 0.0
    %372 = vmatmul.mubr.f32.gmra.mxu0 %v87
    %v373 = vpop.f32.mrf.mxu0
    %v374 = vadd.f32 0.0, %v373
    %v375 = vpop.f32.mrf.mxu0
    %376 = vmatprep.mubr.f32.mxu0 0.0
    %377 = vmatmul.mubr.f32.gmra.mxu0 %v88
    %v378 = vpop.f32.mrf.mxu0
    %v379 = vadd.f32 0.0, %v378
    %v380 = vpop.f32.mrf.mxu0
    %381 = vmatprep.mubr.f32.mxu0 0.0
    %382 = vmatmul.mubr.f32.gmra.mxu0 %v89
    %v383 = vpop.f32.mrf.mxu0
    %v384 = vadd.f32 0.0, %v383
    %v385 = vpop.f32.mrf.mxu0
    %386 = vmatprep.mubr.f32.mxu0 0.0
    %387 = vmatmul.mubr.f32.gmra.mxu0 %v90
    %v388 = vpop.f32.mrf.mxu0
    %v389 = vadd.f32 0.0, %v388
    %v390 = vpop.f32.mrf.mxu0
    %391 = vmatprep.mubr.f32.mxu0 0.0
    %392 = vmatmul.mubr.f32.gmra.mxu0 %v91
    %v393 = vpop.f32.mrf.mxu0
    %v394 = vadd.f32 0.0, %v393
    %v395 = vpop.f32.mrf.mxu0
    %396 = vmatprep.mubr.f32.mxu0 0.0
    %397 = vmatmul.mubr.f32.gmra.mxu0 %v92
    %v398 = vpop.f32.mrf.mxu0
    %v399 = vadd.f32 0.0, %v398
    %v400 = vpop.f32.mrf.mxu0
    %401 = vmatprep.mubr.f32.mxu0 0.0
    %402 = vmatmul.mubr.f32.gmra.mxu0 %v93
    %v403 = vpop.f32.mrf.mxu0
    %v404 = vadd.f32 0.0, %v403
    %v405 = vpop.f32.mrf.mxu0
    %406 = vmatprep.mubr.f32.mxu0 0.0
    %407 = vmatmul.mubr.f32.gmra.mxu0 %v94
    %v408 = vpop.f32.mrf.mxu0
    %v409 = vadd.f32 0.0, %v408
    %v410 = vpop.f32.mrf.mxu0
    %411 = vmatprep.mubr.f32.mxu0 0.0
    %412 = vmatmul.mubr.f32.gmra.mxu0 %v95
    %v413 = vpop.f32.mrf.mxu0
    %v414 = vadd.f32 0.0, %v413
    %v415 = vpop.f32.mrf.mxu0
    %416 = vmatprep.mubr.f32.mxu0 0.0
    %417 = vmatmul.mubr.f32.gmra.mxu0 %v96
    %v418 = vpop.f32.mrf.mxu0
    %v419 = vadd.f32 0.0, %v418
    %v420 = vpop.f32.mrf.mxu0
    %421 = vmatprep.mubr.f32.mxu0 0.0
    %422 = vmatmul.mubr.f32.gmra.mxu0 %v97
    %v423 = vpop.f32.mrf.mxu0
    %v424 = vadd.f32 0.0, %v423
    %v425 = vpop.f32.mrf.mxu0
    %426 = vmatprep.mubr.f32.mxu0 0.0
    %427 = vmatmul.mubr.f32.gmra.mxu0 %v98
    %v428 = vpop.f32.mrf.mxu0
    %v429 = vadd.f32 0.0, %v428
    %v430 = vpop.f32.mrf.mxu0
    %431 = vmatprep.mubr.f32.mxu0 0.0
    %432 = vmatmul.mubr.f32.gmra.mxu0 %v99
    %v433 = vpop.f32.mrf.mxu0
    %v434 = vadd.f32 0.0, %v433
    %v435 = vpop.f32.mrf.mxu0
    %436 = vmatprep.mubr.f32.mxu0 0.0
    %437 = vmatmul.mubr.f32.gmra.mxu0 %v100
    %v438 = vpop.f32.mrf.mxu0
    %v439 = vadd.f32 0.0, %v438
    %v440 = vpop.f32.mrf.mxu0
    %441 = vmatprep.mubr.f32.mxu0 0.0
    %442 = vmatmul.mubr.f32.gmra.mxu0 %v101
    %v443 = vpop.f32.mrf.mxu0
    %v444 = vadd.f32 0.0, %v443
    %v445 = vpop.f32.mrf.mxu0
    %446 = vmatprep.mubr.f32.mxu0 0.0
    %447 = vmatmul.mubr.f32.gmra.mxu0 %v102
    %v448 = vpop.f32.mrf.mxu0
    %v449 = vadd.f32 0.0, %v448
    %v450 = vpop.f32.mrf.mxu0
    %451 = vmatprep.mubr.f32.mxu0 0.0
    %452 = vmatmul.mubr.f32.gmra.mxu0 %v103
    %v453 = vpop.f32.mrf.mxu0
    %v454 = vadd.f32 0.0, %v453
    %v455 = vpop.f32.mrf.mxu0
    %456 = vmatprep.mubr.f32.mxu0 0.0
    %457 = vmatmul.mubr.f32.gmra.mxu0 %v104
    %v458 = vpop.f32.mrf.mxu0
    %v459 = vadd.f32 0.0, %v458
    %v460 = vpop.f32.mrf.mxu0
    %461 = vmatprep.mubr.f32.mxu0 0.0
    %462 = vmatmul.mubr.f32.gmra.mxu0 %v105
    %v463 = vpop.f32.mrf.mxu0
    %v464 = vadd.f32 0.0, %v463
    %v465 = vpop.f32.mrf.mxu0
    %466 = vmatprep.mubr.f32.mxu0 0.0
    %467 = vmatmul.mubr.f32.gmra.mxu0 %v106
    %v468 = vpop.f32.mrf.mxu0
    %v469 = vadd.f32 0.0, %v468
    %v470 = vpop.f32.mrf.mxu0
    %471 = vmatprep.mubr.f32.mxu0 0.0
    %472 = vmatmul.mubr.f32.gmra.mxu0 %v107
    %v473 = vpop.f32.mrf.mxu0
    %v474 = vadd.f32 0.0, %v473
    %v475 = vpop.f32.mrf.mxu0
    %476 = vmatprep.mubr.f32.mxu0 0.0
    %477 = vmatmul.mubr.f32.gmra.mxu0 %v108
    %v478 = vpop.f32.mrf.mxu0
    %v479 = vadd.f32 0.0, %v478
    %v480 = vpop.f32.mrf.mxu0
    %481 = vmatprep.mubr.f32.mxu0 0.0
    %482 = vmatmul.mubr.f32.gmra.mxu0 %v109
    %v483 = vpop.f32.mrf.mxu0
    %v484 = vadd.f32 0.0, %v483
    %v485 = vpop.f32.mrf.mxu0
    %486 = vmatprep.mubr.f32.mxu0 0.0
    %487 = vmatmul.mubr.f32.gmra.mxu0 %v110
    %v488 = vpop.f32.mrf.mxu0
    %v489 = vadd.f32 0.0, %v488
    %v490 = vpop.f32.mrf.mxu0
    %491 = vmatprep.mubr.f32.mxu0 0.0
    %492 = vmatmul.mubr.f32.gmra.mxu0 %v111
    %v493 = vpop.f32.mrf.mxu0
    %v494 = vadd.f32 0.0, %v493
    %v495 = vpop.f32.mrf.mxu0
    %496 = vmatprep.mubr.f32.mxu0 0.0
    %497 = vmatmul.mubr.f32.gmra.mxu0 %v112
    %v498 = vpop.f32.mrf.mxu0
    %v499 = vadd.f32 0.0, %v498
    %v500 = vpop.f32.mrf.mxu0
    %501 = vmatprep.mubr.f32.mxu0 0.0
    %502 = vmatmul.mubr.f32.gmra.mxu0 %v113
    %v503 = vpop.f32.mrf.mxu0
    %v504 = vadd.f32 0.0, %v503
    %v505 = vpop.f32.mrf.mxu0
    %506 = vmatprep.mubr.f32.mxu0 0.0
    %507 = vmatmul.mubr.f32.gmra.mxu0 %v114
    %v508 = vpop.f32.mrf.mxu0
    %v509 = vadd.f32 0.0, %v508
    %v510 = vpop.f32.mrf.mxu0
    %511 = vmatprep.mubr.f32.mxu0 0.0
    %512 = vmatmul.mubr.f32.gmra.mxu0 %v115
    %v513 = vpop.f32.mrf.mxu0
    %v514 = vadd.f32 0.0, %v513
    %v515 = vpop.f32.mrf.mxu0
    %516 = vdwg.mxu0
    %s517 = scalar_lea.vmem [#allocation8], %s51
    %518 = vst [vmem:[%s517] sm:$0xff] %v199
    %519 = vst [vmem:[%s517 + $0x8] sm:$0xff] %v204
    %520 = vst [vmem:[%s517 + $0x10] sm:$0xff] %v209
    %521 = vst [vmem:[%s517 + $0x18] sm:$0xff] %v214
    %522 = vst [vmem:[%s517 + $0x20] sm:$0xff] %v219
    %523 = vst [vmem:[%s517 + $0x28] sm:$0xff] %v224
    %524 = vst [vmem:[%s517 + $0x30] sm:$0xff] %v229
    %525 = vst [vmem:[%s517 + $0x38] sm:$0xff] %v234
    %526 = vst [vmem:[%s517 + $0x40] sm:$0xff] %v239
    %527 = vst [vmem:[%s517 + $0x48] sm:$0xff] %v244
    %528 = vst [vmem:[%s517 + $0x50] sm:$0xff] %v249
    %529 = vst [vmem:[%s517 + $0x58] sm:$0xff] %v254
    %530 = vst [vmem:[%s517 + $0x60] sm:$0xff] %v259
    %531 = vst [vmem:[%s517 + $0x68] sm:$0xff] %v264
    %532 = vst [vmem:[%s517 + $0x70] sm:$0xff] %v269
    %533 = vst [vmem:[%s517 + $0x78] sm:$0xff] %v274
    %534 = vst [vmem:[%s517 + $0x80] sm:$0xff] %v279
    %535 = vst [vmem:[%s517 + $0x88] sm:$0xff] %v284
    %536 = vst [vmem:[%s517 + $0x90] sm:$0xff] %v289
    %537 = vst [vmem:[%s517 + $0x98] sm:$0xff] %v294
    %538 = vst [vmem:[%s517 + $0xa0] sm:$0xff] %v299
    %539 = vst [vmem:[%s517 + $0xa8] sm:$0xff] %v304
    %540 = vst [vmem:[%s517 + $0xb0] sm:$0xff] %v309
    %541 = vst [vmem:[%s517 + $0xb8] sm:$0xff] %v314
    %542 = vst [vmem:[%s517 + $0xc0] sm:$0xff] %v319
    %543 = vst [vmem:[%s517 + $0xc8] sm:$0xff] %v324
    %544 = vst [vmem:[%s517 + $0xd0] sm:$0xff] %v329
    %545 = vst [vmem:[%s517 + $0xd8] sm:$0xff] %v334
    %546 = vst [vmem:[%s517 + $0xe0] sm:$0xff] %v339
    %547 = vst [vmem:[%s517 + $0xe8] sm:$0xff] %v344
    %548 = vst [vmem:[%s517 + $0xf0] sm:$0xff] %v349
    %549 = vst [vmem:[%s517 + $0xf8] sm:$0xff] %v354
    %550 = vst [vmem:[%s517 + $0x100] sm:$0xff] %v359
    %551 = vst [vmem:[%s517 + $0x108] sm:$0xff] %v364
    %552 = vst [vmem:[%s517 + $0x110] sm:$0xff] %v369
    %553 = vst [vmem:[%s517 + $0x118] sm:$0xff] %v374
    %554 = vst [vmem:[%s517 + $0x120] sm:$0xff] %v379
    %555 = vst [vmem:[%s517 + $0x128] sm:$0xff] %v384
    %556 = vst [vmem:[%s517 + $0x130] sm:$0xff] %v389
    %557 = vst [vmem:[%s517 + $0x138] sm:$0xff] %v394
    %558 = vst [vmem:[%s517 + $0x140] sm:$0xff] %v399
    %559 = vst [vmem:[%s517 + $0x148] sm:$0xff] %v404
    %560 = vst [vmem:[%s517 + $0x150] sm:$0xff] %v409
    %561 = vst [vmem:[%s517 + $0x158] sm:$0xff] %v414
    %562 = vst [vmem:[%s517 + $0x160] sm:$0xff] %v419
    %563 = vst [vmem:[%s517 + $0x168] sm:$0xff] %v424
    %564 = vst [vmem:[%s517 + $0x170] sm:$0xff] %v429
    %565 = vst [vmem:[%s517 + $0x178] sm:$0xff] %v434
    %566 = vst [vmem:[%s517 + $0x180] sm:$0xff] %v439
    %567 = vst [vmem:[%s517 + $0x188] sm:$0xff] %v444
    %568 = vst [vmem:[%s517 + $0x190] sm:$0xff] %v449
    %569 = vst [vmem:[%s517 + $0x198] sm:$0xff] %v454
    %570 = vst [vmem:[%s517 + $0x1a0] sm:$0xff] %v459
    %571 = vst [vmem:[%s517 + $0x1a8] sm:$0xff] %v464
    %572 = vst [vmem:[%s517 + $0x1b0] sm:$0xff] %v469
    %573 = vst [vmem:[%s517 + $0x1b8] sm:$0xff] %v474
    %574 = vst [vmem:[%s517 + $0x1c0] sm:$0xff] %v479
    %575 = vst [vmem:[%s517 + $0x1c8] sm:$0xff] %v484
    %576 = vst [vmem:[%s517 + $0x1d0] sm:$0xff] %v489
    %577 = vst [vmem:[%s517 + $0x1d8] sm:$0xff] %v494
    %578 = vst [vmem:[%s517 + $0x1e0] sm:$0xff] %v499
    %579 = vst [vmem:[%s517 + $0x1e8] sm:$0xff] %v504
    %580 = vst [vmem:[%s517 + $0x1f0] sm:$0xff] %v509
    %581 = vst [vmem:[%s517 + $0x1f8] sm:$0xff] %v514
    %v582 = vld [vmem:[%s517] sm:$0xff]
    %v583 = vld [vmem:[%s517 + $0x8] sm:$0xff]
    %v584 = vld [vmem:[%s517 + $0x10] sm:$0xff]
    %v585 = vld [vmem:[%s517 + $0x18] sm:$0xff]
    %v586 = vld [vmem:[%s517 + $0x20] sm:$0xff]
    %v587 = vld [vmem:[%s517 + $0x28] sm:$0xff]
    %v588 = vld [vmem:[%s517 + $0x30] sm:$0xff]
    %v589 = vld [vmem:[%s517 + $0x38] sm:$0xff]
    %v590 = vld [vmem:[%s517 + $0x40] sm:$0xff]
    %v591 = vld [vmem:[%s517 + $0x48] sm:$0xff]
    %v592 = vld [vmem:[%s517 + $0x50] sm:$0xff]
    %v593 = vld [vmem:[%s517 + $0x58] sm:$0xff]
    %v594 = vld [vmem:[%s517 + $0x60] sm:$0xff]
    %v595 = vld [vmem:[%s517 + $0x68] sm:$0xff]
    %v596 = vld [vmem:[%s517 + $0x70] sm:$0xff]
    %v597 = vld [vmem:[%s517 + $0x78] sm:$0xff]
    %v598 = vld [vmem:[%s517 + $0x80] sm:$0xff]
    %v599 = vld [vmem:[%s517 + $0x88] sm:$0xff]
    %v600 = vld [vmem:[%s517 + $0x90] sm:$0xff]
    %v601 = vld [vmem:[%s517 + $0x98] sm:$0xff]
    %v602 = vld [vmem:[%s517 + $0xa0] sm:$0xff]
    %v603 = vld [vmem:[%s517 + $0xa8] sm:$0xff]
    %v604 = vld [vmem:[%s517 + $0xb0] sm:$0xff]
    %v605 = vld [vmem:[%s517 + $0xb8] sm:$0xff]
    %v606 = vld [vmem:[%s517 + $0xc0] sm:$0xff]
    %v607 = vld [vmem:[%s517 + $0xc8] sm:$0xff]
    %v608 = vld [vmem:[%s517 + $0xd0] sm:$0xff]
    %v609 = vld [vmem:[%s517 + $0xd8] sm:$0xff]
    %v610 = vld [vmem:[%s517 + $0xe0] sm:$0xff]
    %v611 = vld [vmem:[%s517 + $0xe8] sm:$0xff]
    %v612 = vld [vmem:[%s517 + $0xf0] sm:$0xff]
    %v613 = vld [vmem:[%s517 + $0xf8] sm:$0xff]
    %v614 = vld [vmem:[%s517 + $0x100] sm:$0xff]
    %v615 = vld [vmem:[%s517 + $0x108] sm:$0xff]
    %v616 = vld [vmem:[%s517 + $0x110] sm:$0xff]
    %v617 = vld [vmem:[%s517 + $0x118] sm:$0xff]
    %v618 = vld [vmem:[%s517 + $0x120] sm:$0xff]
    %v619 = vld [vmem:[%s517 + $0x128] sm:$0xff]
    %v620 = vld [vmem:[%s517 + $0x130] sm:$0xff]
    %v621 = vld [vmem:[%s517 + $0x138] sm:$0xff]
    %v622 = vld [vmem:[%s517 + $0x140] sm:$0xff]
    %v623 = vld [vmem:[%s517 + $0x148] sm:$0xff]
    %v624 = vld [vmem:[%s517 + $0x150] sm:$0xff]
    %v625 = vld [vmem:[%s517 + $0x158] sm:$0xff]
    %v626 = vld [vmem:[%s517 + $0x160] sm:$0xff]
    %v627 = vld [vmem:[%s517 + $0x168] sm:$0xff]
    %v628 = vld [vmem:[%s517 + $0x170] sm:$0xff]
    %v629 = vld [vmem:[%s517 + $0x178] sm:$0xff]
    %v630 = vld [vmem:[%s517 + $0x180] sm:$0xff]
    %v631 = vld [vmem:[%s517 + $0x188] sm:$0xff]
    %v632 = vld [vmem:[%s517 + $0x190] sm:$0xff]
    %v633 = vld [vmem:[%s517 + $0x198] sm:$0xff]
    %v634 = vld [vmem:[%s517 + $0x1a0] sm:$0xff]
    %v635 = vld [vmem:[%s517 + $0x1a8] sm:$0xff]
    %v636 = vld [vmem:[%s517 + $0x1b0] sm:$0xff]
    %v637 = vld [vmem:[%s517 + $0x1b8] sm:$0xff]
    %v638 = vld [vmem:[%s517 + $0x1c0] sm:$0xff]
    %v639 = vld [vmem:[%s517 + $0x1c8] sm:$0xff]
    %v640 = vld [vmem:[%s517 + $0x1d0] sm:$0xff]
    %v641 = vld [vmem:[%s517 + $0x1d8] sm:$0xff]
    %v642 = vld [vmem:[%s517 + $0x1e0] sm:$0xff]
    %v643 = vld [vmem:[%s517 + $0x1e8] sm:$0xff]
    %v644 = vld [vmem:[%s517 + $0x1f0] sm:$0xff]
    %v645 = vld [vmem:[%s517 + $0x1f8] sm:$0xff]
    %v646 = vld [vmem:[#allocation2] sm:$0x1]
    %v647 = vadd.f32 %v582, %v583
    %v648 = vadd.f32 %v647, %v584
    %v649 = vadd.f32 %v648, %v585
    %v650 = vadd.f32 %v649, %v586
    %v651 = vadd.f32 %v650, %v587
    %v652 = vadd.f32 %v651, %v588
    %v653 = vadd.f32 %v652, %v589
    %v654 = vadd.f32 %v653, %v590
    %v655 = vadd.f32 %v654, %v591
    %v656 = vadd.f32 %v655, %v592
    %v657 = vadd.f32 %v656, %v593
    %v658 = vadd.f32 %v657, %v594
    %v659 = vadd.f32 %v658, %v595
    %v660 = vadd.f32 %v659, %v596
    %v661 = vadd.f32 %v660, %v597
    %v662 = vadd.f32 %v661, %v598
    %v663 = vadd.f32 %v662, %v599
    %v664 = vadd.f32 %v663, %v600
    %v665 = vadd.f32 %v664, %v601
    %v666 = vadd.f32 %v665, %v602
    %v667 = vadd.f32 %v666, %v603
    %v668 = vadd.f32 %v667, %v604
    %v669 = vadd.f32 %v668, %v605
    %v670 = vadd.f32 %v669, %v606
    %v671 = vadd.f32 %v670, %v607
    %v672 = vadd.f32 %v671, %v608
    %v673 = vadd.f32 %v672, %v609
    %v674 = vadd.f32 %v673, %v610
    %v675 = vadd.f32 %v674, %v611
    %v676 = vadd.f32 %v675, %v612
    %v677 = vadd.f32 %v676, %v613
    %v678 = vadd.f32 %v677, %v614
    %v679 = vadd.f32 %v678, %v615
    %v680 = vadd.f32 %v679, %v616
    %v681 = vadd.f32 %v680, %v617
    %v682 = vadd.f32 %v681, %v618
    %v683 = vadd.f32 %v682, %v619
    %v684 = vadd.f32 %v683, %v620
    %v685 = vadd.f32 %v684, %v621
    %v686 = vadd.f32 %v685, %v622
    %v687 = vadd.f32 %v686, %v623
    %v688 = vadd.f32 %v687, %v624
    %v689 = vadd.f32 %v688, %v625
    %v690 = vadd.f32 %v689, %v626
    %v691 = vadd.f32 %v690, %v627
    %v692 = vadd.f32 %v691, %v628
    %v693 = vadd.f32 %v692, %v629
    %v694 = vadd.f32 %v693, %v630
    %v695 = vadd.f32 %v694, %v631
    %v696 = vadd.f32 %v695, %v632
    %v697 = vadd.f32 %v696, %v633
    %v698 = vadd.f32 %v697, %v634
    %v699 = vadd.f32 %v698, %v635
    %v700 = vadd.f32 %v699, %v636
    %v701 = vadd.f32 %v700, %v637
    %v702 = vadd.f32 %v701, %v638
    %v703 = vadd.f32 %v702, %v639
    %v704 = vadd.f32 %v703, %v640
    %v705 = vadd.f32 %v704, %v641
    %v706 = vadd.f32 %v705, %v642
    %v707 = vadd.f32 %v706, %v643
    %v708 = vadd.f32 %v707, %v644
    %v709 = vadd.f32 %v708, %v645
    %v710 = vrot.slane %v709, 4
    %v711 = vadd.f32 %v709, %v710
    %v712 = vrot.slane %v711, 2
    %v713 = vadd.f32 %v711, %v712
    %v714 = vrot.slane %v713, 1
    %v715 = vadd.f32 %v713, %v714
    %v716 = vadd.f32 %v646, %v715
    %717 = vst [vmem:[#allocation2] sm:$0x1] %v716
    // Predicated region
    $region30: #{tpu_custom_call.1} parent=1 // pred_check
      %p718 = pneg %p46
    $region31: #{tpu_custom_call.1} parent=1 // pred_check_branch
      %720 = sbr.rel (%p718) target = $region33
    $region32: #{tpu_custom_call.1} parent=1 // pred_region
      %v721 = vld [vmem:[#allocation2] sm:$0x1]
      %v722 = vmul.f32 %v721, 0.001953125
      %v723 = vld [vmem:[#allocation8] sm:$0xff]
      %v724 = vld [vmem:[#allocation8 + $0x8] sm:$0xff]
      %v725 = vld [vmem:[#allocation8 + $0x10] sm:$0xff]
      %v726 = vld [vmem:[#allocation8 + $0x18] sm:$0xff]
      %v727 = vld [vmem:[#allocation8 + $0x20] sm:$0xff]
      %v728 = vld [vmem:[#allocation8 + $0x28] sm:$0xff]
      %v729 = vld [vmem:[#allocation8 + $0x30] sm:$0xff]
      %v730 = vld [vmem:[#allocation8 + $0x38] sm:$0xff]
      %v731 = vld [vmem:[#allocation8 + $0x40] sm:$0xff]
      %v732 = vld [vmem:[#allocation8 + $0x48] sm:$0xff]
      %v733 = vld [vmem:[#allocation8 + $0x50] sm:$0xff]
      %v734 = vld [vmem:[#allocation8 + $0x58] sm:$0xff]
      %v735 = vld [vmem:[#allocation8 + $0x60] sm:$0xff]
      %v736 = vld [vmem:[#allocation8 + $0x68] sm:$0xff]
      %v737 = vld [vmem:[#allocation8 + $0x70] sm:$0xff]
      %v738 = vld [vmem:[#allocation8 + $0x78] sm:$0xff]
      %v739 = vld [vmem:[#allocation8 + $0x80] sm:$0xff]
      %v740 = vld [vmem:[#allocation8 + $0x88] sm:$0xff]
      %v741 = vld [vmem:[#allocation8 + $0x90] sm:$0xff]
      %v742 = vld [vmem:[#allocation8 + $0x98] sm:$0xff]
      %v743 = vld [vmem:[#allocation8 + $0xa0] sm:$0xff]
      %v744 = vld [vmem:[#allocation8 + $0xa8] sm:$0xff]
      %v745 = vld [vmem:[#allocation8 + $0xb0] sm:$0xff]
      %v746 = vld [vmem:[#allocation8 + $0xb8] sm:$0xff]
      %v747 = vld [vmem:[#allocation8 + $0xc0] sm:$0xff]
      %v748 = vld [vmem:[#allocation8 + $0xc8] sm:$0xff]
      %v749 = vld [vmem:[#allocation8 + $0xd0] sm:$0xff]
      %v750 = vld [vmem:[#allocation8 + $0xd8] sm:$0xff]
      %v751 = vld [vmem:[#allocation8 + $0xe0] sm:$0xff]
      %v752 = vld [vmem:[#allocation8 + $0xe8] sm:$0xff]
      %v753 = vld [vmem:[#allocation8 + $0xf0] sm:$0xff]
      %v754 = vld [vmem:[#allocation8 + $0xf8] sm:$0xff]
      %v755 = vld [vmem:[#allocation8 + $0x100] sm:$0xff]
      %v756 = vld [vmem:[#allocation8 + $0x108] sm:$0xff]
      %v757 = vld [vmem:[#allocation8 + $0x110] sm:$0xff]
      %v758 = vld [vmem:[#allocation8 + $0x118] sm:$0xff]
      %v759 = vld [vmem:[#allocation8 + $0x120] sm:$0xff]
      %v760 = vld [vmem:[#allocation8 + $0x128] sm:$0xff]
      %v761 = vld [vmem:[#allocation8 + $0x130] sm:$0xff]
      %v762 = vld [vmem:[#allocation8 + $0x138] sm:$0xff]
      %v763 = vld [vmem:[#allocation8 + $0x140] sm:$0xff]
      %v764 = vld [vmem:[#allocation8 + $0x148] sm:$0xff]
      %v765 = vld [vmem:[#allocation8 + $0x150] sm:$0xff]
      %v766 = vld [vmem:[#allocation8 + $0x158] sm:$0xff]
      %v767 = vld [vmem:[#allocation8 + $0x160] sm:$0xff]
      %v768 = vld [vmem:[#allocation8 + $0x168] sm:$0xff]
      %v769 = vld [vmem:[#allocation8 + $0x170] sm:$0xff]
      %v770 = vld [vmem:[#allocation8 + $0x178] sm:$0xff]
      %v771 = vld [vmem:[#allocation8 + $0x180] sm:$0xff]
      %v772 = vld [vmem:[#allocation8 + $0x188] sm:$0xff]
      %v773 = vld [vmem:[#allocation8 + $0x190] sm:$0xff]
      %v774 = vld [vmem:[#allocation8 + $0x198] sm:$0xff]
      %v775 = vld [vmem:[#allocation8 + $0x1a0] sm:$0xff]
      %v776 = vld [vmem:[#allocation8 + $0x1a8] sm:$0xff]
      %v777 = vld [vmem:[#allocation8 + $0x1b0] sm:$0xff]
      %v778 = vld [vmem:[#allocation8 + $0x1b8] sm:$0xff]
      %v779 = vld [vmem:[#allocation8 + $0x1c0] sm:$0xff]
      %v780 = vld [vmem:[#allocation8 + $0x1c8] sm:$0xff]
      %v781 = vld [vmem:[#allocation8 + $0x1d0] sm:$0xff]
      %v782 = vld [vmem:[#allocation8 + $0x1d8] sm:$0xff]
      %v783 = vld [vmem:[#allocation8 + $0x1e0] sm:$0xff]
      %v784 = vld [vmem:[#allocation8 + $0x1e8] sm:$0xff]
      %v785 = vld [vmem:[#allocation8 + $0x1f0] sm:$0xff]
      %v786 = vld [vmem:[#allocation8 + $0x1f8] sm:$0xff]
      %v787 = vlaneseq
      %v788 = vshrl.u32 %v787, 7
      %v789 = vadd.s32 %v788, 8
      %v790 = vadd.s32 %v788, 16
      %v791 = vadd.s32 %v788, 24
      %v792 = vadd.s32 %v788, 32
      %v793 = vadd.s32 %v788, 40
      %v794 = vadd.s32 %v788, 48
      %v795 = vadd.s32 %v788, 56
      %v796 = vadd.s32 %v788, 64
      %v797 = vadd.s32 %v788, 72
      %v798 = vadd.s32 %v788, 80
      %v799 = vadd.s32 %v788, 88
      %v800 = vadd.s32 %v788, 96
      %v801 = vadd.s32 %v788, 104
      %v802 = vadd.s32 %v788, 112
      %v803 = vadd.s32 %v788, 120
      %v804 = vadd.s32 %v788, 128
      %v805 = vadd.s32 %v788, 136
      %v806 = vadd.s32 %v788, 144
      %v807 = vadd.s32 %v788, 152
      %v808 = vadd.s32 %v788, 160
      %v809 = vadd.s32 %v788, 168
      %v810 = vadd.s32 %v788, 176
      %v811 = vadd.s32 %v788, 184
      %v812 = vadd.s32 %v788, 192
      %v813 = vadd.s32 %v788, 200
      %v814 = vadd.s32 %v788, 208
      %v815 = vadd.s32 %v788, 216
      %v816 = vadd.s32 %v788, 224
      %v817 = vadd.s32 %v788, 232
      %v818 = vadd.s32 %v788, 240
      %v819 = vadd.s32 %v788, 248
      %v820 = vadd.s32 %v788, 256
      %v821 = vadd.s32 %v788, 264
      %v822 = vadd.s32 %v788, 272
      %v823 = vadd.s32 %v788, 280
      %v824 = vadd.s32 %v788, 288
      %v825 = vadd.s32 %v788, 296
      %v826 = vadd.s32 %v788, 304
      %v827 = vadd.s32 %v788, 312
      %v828 = vadd.s32 %v788, 320
      %v829 = vadd.s32 %v788, 328
      %v830 = vadd.s32 %v788, 336
      %v831 = vadd.s32 %v788, 344
      %v832 = vadd.s32 %v788, 352
      %v833 = vadd.s32 %v788, 360
      %v834 = vadd.s32 %v788, 368
      %v835 = vadd.s32 %v788, 376
      %v836 = vadd.s32 %v788, 384
      %v837 = vadd.s32 %v788, 392
      %v838 = vadd.s32 %v788, 400
      %v839 = vadd.s32 %v788, 408
      %v840 = vadd.s32 %v788, 416
      %v841 = vadd.s32 %v788, 424
      %v842 = vadd.s32 %v788, 432
      %v843 = vadd.s32 %v788, 440
      %v844 = vadd.s32 %v788, 448
      %v845 = vadd.s32 %v788, 456
      %v846 = vadd.s32 %v788, 464
      %v847 = vadd.s32 %v788, 472
      %v848 = vadd.s32 %v788, 480
      %v849 = vadd.s32 %v788, 488
      %v850 = vadd.s32 %v788, 496
      %v851 = vadd.s32 %v788, 504
      %v852 = vstv 0
      %v853 = vadd.s32 %v788, %v852
      %v854 = vadd.s32 %v789, %v852
      %v855 = vadd.s32 %v790, %v852
      %v856 = vadd.s32 %v791, %v852
      %v857 = vadd.s32 %v792, %v852
      %v858 = vadd.s32 %v793, %v852
      %v859 = vadd.s32 %v794, %v852
      %v860 = vadd.s32 %v795, %v852
      %v861 = vadd.s32 %v796, %v852
      %v862 = vadd.s32 %v797, %v852
      %v863 = vadd.s32 %v798, %v852
      %v864 = vadd.s32 %v799, %v852
      %v865 = vadd.s32 %v800, %v852
      %v866 = vadd.s32 %v801, %v852
      %v867 = vadd.s32 %v802, %v852
      %v868 = vadd.s32 %v803, %v852
      %v869 = vadd.s32 %v804, %v852
      %v870 = vadd.s32 %v805, %v852
      %v871 = vadd.s32 %v806, %v852
      %v872 = vadd.s32 %v807, %v852
      %v873 = vadd.s32 %v808, %v852
      %v874 = vadd.s32 %v809, %v852
      %v875 = vadd.s32 %v810, %v852
      %v876 = vadd.s32 %v811, %v852
      %v877 = vadd.s32 %v812, %v852
      %v878 = vadd.s32 %v813, %v852
      %v879 = vadd.s32 %v814, %v852
      %v880 = vadd.s32 %v815, %v852
      %v881 = vadd.s32 %v816, %v852
      %v882 = vadd.s32 %v817, %v852
      %v883 = vadd.s32 %v818, %v852
      %v884 = vadd.s32 %v819, %v852
      %v885 = vadd.s32 %v820, %v852
      %v886 = vadd.s32 %v821, %v852
      %v887 = vadd.s32 %v822, %v852
      %v888 = vadd.s32 %v823, %v852
      %v889 = vadd.s32 %v824, %v852
      %v890 = vadd.s32 %v825, %v852
      %v891 = vadd.s32 %v826, %v852
      %v892 = vadd.s32 %v827, %v852
      %v893 = vadd.s32 %v828, %v852
      %v894 = vadd.s32 %v829, %v852
      %v895 = vadd.s32 %v830, %v852
      %v896 = vadd.s32 %v831, %v852
      %v897 = vadd.s32 %v832, %v852
      %v898 = vadd.s32 %v833, %v852
      %v899 = vadd.s32 %v834, %v852
      %v900 = vadd.s32 %v835, %v852
      %v901 = vadd.s32 %v836, %v852
      %v902 = vadd.s32 %v837, %v852
      %v903 = vadd.s32 %v838, %v852
      %v904 = vadd.s32 %v839, %v852
      %v905 = vadd.s32 %v840, %v852
      %v906 = vadd.s32 %v841, %v852
      %v907 = vadd.s32 %v842, %v852
      %v908 = vadd.s32 %v843, %v852
      %v909 = vadd.s32 %v844, %v852
      %v910 = vadd.s32 %v845, %v852
      %v911 = vadd.s32 %v846, %v852
      %v912 = vadd.s32 %v847, %v852
      %v913 = vadd.s32 %v848, %v852
      %v914 = vadd.s32 %v849, %v852
      %v915 = vadd.s32 %v850, %v852
      %v916 = vadd.s32 %v851, %v852
      %vm917 = vcmp.lt.s32.totalorder %v853, 512
      %vm918 = vcmp.lt.s32.totalorder %v854, 512
      %vm919 = vcmp.lt.s32.totalorder %v855, 512
      %vm920 = vcmp.lt.s32.totalorder %v856, 512
      %vm921 = vcmp.lt.s32.totalorder %v857, 512
      %vm922 = vcmp.lt.s32.totalorder %v858, 512
      %vm923 = vcmp.lt.s32.totalorder %v859, 512
      %vm924 = vcmp.lt.s32.totalorder %v860, 512
      %vm925 = vcmp.lt.s32.totalorder %v861, 512
      %vm926 = vcmp.lt.s32.totalorder %v862, 512
      %vm927 = vcmp.lt.s32.totalorder %v863, 512
      %vm928 = vcmp.lt.s32.totalorder %v864, 512
      %vm929 = vcmp.lt.s32.totalorder %v865, 512
      %vm930 = vcmp.lt.s32.totalorder %v866, 512
      %vm931 = vcmp.lt.s32.totalorder %v867, 512
      %vm932 = vcmp.lt.s32.totalorder %v868, 512
      %vm933 = vcmp.lt.s32.totalorder %v869, 512
      %vm934 = vcmp.lt.s32.totalorder %v870, 512
      %vm935 = vcmp.lt.s32.totalorder %v871, 512
      %vm936 = vcmp.lt.s32.totalorder %v872, 512
      %vm937 = vcmp.lt.s32.totalorder %v873, 512
      %vm938 = vcmp.lt.s32.totalorder %v874, 512
      %vm939 = vcmp.lt.s32.totalorder %v875, 512
      %vm940 = vcmp.lt.s32.totalorder %v876, 512
      %vm941 = vcmp.lt.s32.totalorder %v877, 512
      %vm942 = vcmp.lt.s32.totalorder %v878, 512
      %vm943 = vcmp.lt.s32.totalorder %v879, 512
      %vm944 = vcmp.lt.s32.totalorder %v880, 512
      %vm945 = vcmp.lt.s32.totalorder %v881, 512
      %vm946 = vcmp.lt.s32.totalorder %v882, 512
      %vm947 = vcmp.lt.s32.totalorder %v883, 512
      %vm948 = vcmp.lt.s32.totalorder %v884, 512
      %vm949 = vcmp.lt.s32.totalorder %v885, 512
      %vm950 = vcmp.lt.s32.totalorder %v886, 512
      %vm951 = vcmp.lt.s32.totalorder %v887, 512
      %vm952 = vcmp.lt.s32.totalorder %v888, 512
      %vm953 = vcmp.lt.s32.totalorder %v889, 512
      %vm954 = vcmp.lt.s32.totalorder %v890, 512
      %vm955 = vcmp.lt.s32.totalorder %v891, 512
      %vm956 = vcmp.lt.s32.totalorder %v892, 512
      %vm957 = vcmp.lt.s32.totalorder %v893, 512
      %vm958 = vcmp.lt.s32.totalorder %v894, 512
      %vm959 = vcmp.lt.s32.totalorder %v895, 512
      %vm960 = vcmp.lt.s32.totalorder %v896, 512
      %vm961 = vcmp.lt.s32.totalorder %v897, 512
      %vm962 = vcmp.lt.s32.totalorder %v898, 512
      %vm963 = vcmp.lt.s32.totalorder %v899, 512
      %vm964 = vcmp.lt.s32.totalorder %v900, 512
      %vm965 = vcmp.lt.s32.totalorder %v901, 512
      %vm966 = vcmp.lt.s32.totalorder %v902, 512
      %vm967 = vcmp.lt.s32.totalorder %v903, 512
      %vm968 = vcmp.lt.s32.totalorder %v904, 512
      %vm969 = vcmp.lt.s32.totalorder %v905, 512
      %vm970 = vcmp.lt.s32.totalorder %v906, 512
      %vm971 = vcmp.lt.s32.totalorder %v907, 512
      %vm972 = vcmp.lt.s32.totalorder %v908, 512
      %vm973 = vcmp.lt.s32.totalorder %v909, 512
      %vm974 = vcmp.lt.s32.totalorder %v910, 512
      %vm975 = vcmp.lt.s32.totalorder %v911, 512
      %vm976 = vcmp.lt.s32.totalorder %v912, 512
      %vm977 = vcmp.lt.s32.totalorder %v913, 512
      %vm978 = vcmp.lt.s32.totalorder %v914, 512
      %vm979 = vcmp.lt.s32.totalorder %v915, 512
      %vm980 = vcmp.lt.s32.totalorder %v916, 512
      %v981 = vlaneseq
      %v982 = vshrl.u32 %v981, 7
      %v983 = vsub.s32 0, %v982
      %v984 = vrot.slane %v722, %v983
      %v985 = vsub.f32 %v723, %v984
      %v986 = vsub.f32 %v724, %v984
      %v987 = vsub.f32 %v725, %v984
      %v988 = vsub.f32 %v726, %v984
      %v989 = vsub.f32 %v727, %v984
      %v990 = vsub.f32 %v728, %v984
      %v991 = vsub.f32 %v729, %v984
      %v992 = vsub.f32 %v730, %v984
      %v993 = vsub.f32 %v731, %v984
      %v994 = vsub.f32 %v732, %v984
      %v995 = vsub.f32 %v733, %v984
      %v996 = vsub.f32 %v734, %v984
      %v997 = vsub.f32 %v735, %v984
      %v998 = vsub.f32 %v736, %v984
      %v999 = vsub.f32 %v737, %v984
      %v1000 = vsub.f32 %v738, %v984
      %v1001 = vsub.f32 %v739, %v984
      %v1002 = vsub.f32 %v740, %v984
      %v1003 = vsub.f32 %v741, %v984
      %v1004 = vsub.f32 %v742, %v984
      %v1005 = vsub.f32 %v743, %v984
      %v1006 = vsub.f32 %v744, %v984
      %v1007 = vsub.f32 %v745, %v984
      %v1008 = vsub.f32 %v746, %v984
      %v1009 = vsub.f32 %v747, %v984
      %v1010 = vsub.f32 %v748, %v984
      %v1011 = vsub.f32 %v749, %v984
      %v1012 = vsub.f32 %v750, %v984
      %v1013 = vsub.f32 %v751, %v984
      %v1014 = vsub.f32 %v752, %v984
      %v1015 = vsub.f32 %v753, %v984
      %v1016 = vsub.f32 %v754, %v984
      %v1017 = vsub.f32 %v755, %v984
      %v1018 = vsub.f32 %v756, %v984
      %v1019 = vsub.f32 %v757, %v984
      %v1020 = vsub.f32 %v758, %v984
      %v1021 = vsub.f32 %v759, %v984
      %v1022 = vsub.f32 %v760, %v984
      %v1023 = vsub.f32 %v761, %v984
      %v1024 = vsub.f32 %v762, %v984
      %v1025 = vsub.f32 %v763, %v984
      %v1026 = vsub.f32 %v764, %v984
      %v1027 = vsub.f32 %v765, %v984
      %v1028 = vsub.f32 %v766, %v984
      %v1029 = vsub.f32 %v767, %v984
      %v1030 = vsub.f32 %v768, %v984
      %v1031 = vsub.f32 %v769, %v984
      %v1032 = vsub.f32 %v770, %v984
      %v1033 = vsub.f32 %v771, %v984
      %v1034 = vsub.f32 %v772, %v984
      %v1035 = vsub.f32 %v773, %v984
      %v1036 = vsub.f32 %v774, %v984
      %v1037 = vsub.f32 %v775, %v984
      %v1038 = vsub.f32 %v776, %v984
      %v1039 = vsub.f32 %v777, %v984
      %v1040 = vsub.f32 %v778, %v984
      %v1041 = vsub.f32 %v779, %v984
      %v1042 = vsub.f32 %v780, %v984
      %v1043 = vsub.f32 %v781, %v984
      %v1044 = vsub.f32 %v782, %v984
      %v1045 = vsub.f32 %v783, %v984
      %v1046 = vsub.f32 %v784, %v984
      %v1047 = vsub.f32 %v785, %v984
      %v1048 = vsub.f32 %v786, %v984
      %v1049 = vsel %vm917, %v985, 0.0
      %v1050 = vsel %vm918, %v986, 0.0
      %v1051 = vsel %vm919, %v987, 0.0
      %v1052 = vsel %vm920, %v988, 0.0
      %v1053 = vsel %vm921, %v989, 0.0
      %v1054 = vsel %vm922, %v990, 0.0
      %v1055 = vsel %vm923, %v991, 0.0
      %v1056 = vsel %vm924, %v992, 0.0
      %v1057 = vsel %vm925, %v993, 0.0
      %v1058 = vsel %vm926, %v994, 0.0
      %v1059 = vsel %vm927, %v995, 0.0
      %v1060 = vsel %vm928, %v996, 0.0
      %v1061 = vsel %vm929, %v997, 0.0
      %v1062 = vsel %vm930, %v998, 0.0
      %v1063 = vsel %vm931, %v999, 0.0
      %v1064 = vsel %vm932, %v1000, 0.0
      %v1065 = vsel %vm933, %v1001, 0.0
      %v1066 = vsel %vm934, %v1002, 0.0
      %v1067 = vsel %vm935, %v1003, 0.0
      %v1068 = vsel %vm936, %v1004, 0.0
      %v1069 = vsel %vm937, %v1005, 0.0
      %v1070 = vsel %vm938, %v1006, 0.0
      %v1071 = vsel %vm939, %v1007, 0.0
      %v1072 = vsel %vm940, %v1008, 0.0
      %v1073 = vsel %vm941, %v1009, 0.0
      %v1074 = vsel %vm942, %v1010, 0.0
      %v1075 = vsel %vm943, %v1011, 0.0
      %v1076 = vsel %vm944, %v1012, 0.0
      %v1077 = vsel %vm945, %v1013, 0.0
      %v1078 = vsel %vm946, %v1014, 0.0
      %v1079 = vsel %vm947, %v1015, 0.0
      %v1080 = vsel %vm948, %v1016, 0.0
      %v1081 = vsel %vm949, %v1017, 0.0
      %v1082 = vsel %vm950, %v1018, 0.0
      %v1083 = vsel %vm951, %v1019, 0.0
      %v1084 = vsel %vm952, %v1020, 0.0
      %v1085 = vsel %vm953, %v1021, 0.0
      %v1086 = vsel %vm954, %v1022, 0.0
      %v1087 = vsel %vm955, %v1023, 0.0
      %v1088 = vsel %vm956, %v1024, 0.0
      %v1089 = vsel %vm957, %v1025, 0.0
      %v1090 = vsel %vm958, %v1026, 0.0
      %v1091 = vsel %vm959, %v1027, 0.0
      %v1092 = vsel %vm960, %v1028, 0.0
      %v1093 = vsel %vm961, %v1029, 0.0
      %v1094 = vsel %vm962, %v1030, 0.0
      %v1095 = vsel %vm963, %v1031, 0.0
      %v1096 = vsel %vm964, %v1032, 0.0
      %v1097 = vsel %vm965, %v1033, 0.0
      %v1098 = vsel %vm966, %v1034, 0.0
      %v1099 = vsel %vm967, %v1035, 0.0
      %v1100 = vsel %vm968, %v1036, 0.0
      %v1101 = vsel %vm969, %v1037, 0.0
      %v1102 = vsel %vm970, %v1038, 0.0
      %v1103 = vsel %vm971, %v1039, 0.0
      %v1104 = vsel %vm972, %v1040, 0.0
      %v1105 = vsel %vm973, %v1041, 0.0
      %v1106 = vsel %vm974, %v1042, 0.0
      %v1107 = vsel %vm975, %v1043, 0.0
      %v1108 = vsel %vm976, %v1044, 0.0
      %v1109 = vsel %vm977, %v1045, 0.0
      %v1110 = vsel %vm978, %v1046, 0.0
      %v1111 = vsel %vm979, %v1047, 0.0
      %v1112 = vsel %vm980, %v1048, 0.0
      %v1113 = vld [vmem:[#allocation2 + $0x1] sm:$0x1]
      %v1114 = vmul.f32 %v1049, %v1049
      %v1115 = vmul.f32 %v1050, %v1050
      %v1116 = vmul.f32 %v1051, %v1051
      %v1117 = vmul.f32 %v1052, %v1052
      %v1118 = vmul.f32 %v1053, %v1053
      %v1119 = vmul.f32 %v1054, %v1054
      %v1120 = vmul.f32 %v1055, %v1055
      %v1121 = vmul.f32 %v1056, %v1056
      %v1122 = vmul.f32 %v1057, %v1057
      %v1123 = vmul.f32 %v1058, %v1058
      %v1124 = vmul.f32 %v1059, %v1059
      %v1125 = vmul.f32 %v1060, %v1060
      %v1126 = vmul.f32 %v1061, %v1061
      %v1127 = vmul.f32 %v1062, %v1062
      %v1128 = vmul.f32 %v1063, %v1063
      %v1129 = vmul.f32 %v1064, %v1064
      %v1130 = vmul.f32 %v1065, %v1065
      %v1131 = vmul.f32 %v1066, %v1066
      %v1132 = vmul.f32 %v1067, %v1067
      %v1133 = vmul.f32 %v1068, %v1068
      %v1134 = vmul.f32 %v1069, %v1069
      %v1135 = vmul.f32 %v1070, %v1070
      %v1136 = vmul.f32 %v1071, %v1071
      %v1137 = vmul.f32 %v1072, %v1072
      %v1138 = vmul.f32 %v1073, %v1073
      %v1139 = vmul.f32 %v1074, %v1074
      %v1140 = vmul.f32 %v1075, %v1075
      %v1141 = vmul.f32 %v1076, %v1076
      %v1142 = vmul.f32 %v1077, %v1077
      %v1143 = vmul.f32 %v1078, %v1078
      %v1144 = vmul.f32 %v1079, %v1079
      %v1145 = vmul.f32 %v1080, %v1080
      %v1146 = vmul.f32 %v1081, %v1081
      %v1147 = vmul.f32 %v1082, %v1082
      %v1148 = vmul.f32 %v1083, %v1083
      %v1149 = vmul.f32 %v1084, %v1084
      %v1150 = vmul.f32 %v1085, %v1085
      %v1151 = vmul.f32 %v1086, %v1086
      %v1152 = vmul.f32 %v1087, %v1087
      %v1153 = vmul.f32 %v1088, %v1088
      %v1154 = vmul.f32 %v1089, %v1089
      %v1155 = vmul.f32 %v1090, %v1090
      %v1156 = vmul.f32 %v1091, %v1091
      %v1157 = vmul.f32 %v1092, %v1092
      %v1158 = vmul.f32 %v1093, %v1093
      %v1159 = vmul.f32 %v1094, %v1094
      %v1160 = vmul.f32 %v1095, %v1095
      %v1161 = vmul.f32 %v1096, %v1096
      %v1162 = vmul.f32 %v1097, %v1097
      %v1163 = vmul.f32 %v1098, %v1098
      %v1164 = vmul.f32 %v1099, %v1099
      %v1165 = vmul.f32 %v1100, %v1100
      %v1166 = vmul.f32 %v1101, %v1101
      %v1167 = vmul.f32 %v1102, %v1102
      %v1168 = vmul.f32 %v1103, %v1103
      %v1169 = vmul.f32 %v1104, %v1104
      %v1170 = vmul.f32 %v1105, %v1105
      %v1171 = vmul.f32 %v1106, %v1106
      %v1172 = vmul.f32 %v1107, %v1107
      %v1173 = vmul.f32 %v1108, %v1108
      %v1174 = vmul.f32 %v1109, %v1109
      %v1175 = vmul.f32 %v1110, %v1110
      %v1176 = vmul.f32 %v1111, %v1111
      %v1177 = vmul.f32 %v1112, %v1112
      %v1178 = vadd.f32 %v1114, %v1115
      %v1179 = vadd.f32 %v1178, %v1116
      %v1180 = vadd.f32 %v1179, %v1117
      %v1181 = vadd.f32 %v1180, %v1118
      %v1182 = vadd.f32 %v1181, %v1119
      %v1183 = vadd.f32 %v1182, %v1120
      %v1184 = vadd.f32 %v1183, %v1121
      %v1185 = vadd.f32 %v1184, %v1122
      %v1186 = vadd.f32 %v1185, %v1123
      %v1187 = vadd.f32 %v1186, %v1124
      %v1188 = vadd.f32 %v1187, %v1125
      %v1189 = vadd.f32 %v1188, %v1126
      %v1190 = vadd.f32 %v1189, %v1127
      %v1191 = vadd.f32 %v1190, %v1128
      %v1192 = vadd.f32 %v1191, %v1129
      %v1193 = vadd.f32 %v1192, %v1130
      %v1194 = vadd.f32 %v1193, %v1131
      %v1195 = vadd.f32 %v1194, %v1132
      %v1196 = vadd.f32 %v1195, %v1133
      %v1197 = vadd.f32 %v1196, %v1134
      %v1198 = vadd.f32 %v1197, %v1135
      %v1199 = vadd.f32 %v1198, %v1136
      %v1200 = vadd.f32 %v1199, %v1137
      %v1201 = vadd.f32 %v1200, %v1138
      %v1202 = vadd.f32 %v1201, %v1139
      %v1203 = vadd.f32 %v1202, %v1140
      %v1204 = vadd.f32 %v1203, %v1141
      %v1205 = vadd.f32 %v1204, %v1142
      %v1206 = vadd.f32 %v1205, %v1143
      %v1207 = vadd.f32 %v1206, %v1144
      %v1208 = vadd.f32 %v1207, %v1145
      %v1209 = vadd.f32 %v1208, %v1146
      %v1210 = vadd.f32 %v1209, %v1147
      %v1211 = vadd.f32 %v1210, %v1148
      %v1212 = vadd.f32 %v1211, %v1149
      %v1213 = vadd.f32 %v1212, %v1150
      %v1214 = vadd.f32 %v1213, %v1151
      %v1215 = vadd.f32 %v1214, %v1152
      %v1216 = vadd.f32 %v1215, %v1153
      %v1217 = vadd.f32 %v1216, %v1154
      %v1218 = vadd.f32 %v1217, %v1155
      %v1219 = vadd.f32 %v1218, %v1156
      %v1220 = vadd.f32 %v1219, %v1157
      %v1221 = vadd.f32 %v1220, %v1158
      %v1222 = vadd.f32 %v1221, %v1159
      %v1223 = vadd.f32 %v1222, %v1160
      %v1224 = vadd.f32 %v1223, %v1161
      %v1225 = vadd.f32 %v1224, %v1162
      %v1226 = vadd.f32 %v1225, %v1163
      %v1227 = vadd.f32 %v1226, %v1164
      %v1228 = vadd.f32 %v1227, %v1165
      %v1229 = vadd.f32 %v1228, %v1166
      %v1230 = vadd.f32 %v1229, %v1167
      %v1231 = vadd.f32 %v1230, %v1168
      %v1232 = vadd.f32 %v1231, %v1169
      %v1233 = vadd.f32 %v1232, %v1170
      %v1234 = vadd.f32 %v1233, %v1171
      %v1235 = vadd.f32 %v1234, %v1172
      %v1236 = vadd.f32 %v1235, %v1173
      %v1237 = vadd.f32 %v1236, %v1174
      %v1238 = vadd.f32 %v1237, %v1175
      %v1239 = vadd.f32 %v1238, %v1176
      %v1240 = vadd.f32 %v1239, %v1177
      %v1241 = vrot.slane %v1240, 4
      %v1242 = vadd.f32 %v1240, %v1241
      %v1243 = vrot.slane %v1242, 2
      %v1244 = vadd.f32 %v1242, %v1243
      %v1245 = vrot.slane %v1244, 1
      %v1246 = vadd.f32 %v1244, %v1245
      %v1247 = vadd.f32 %v1113, %v1246
      %1248 = vst [vmem:[#allocation2 + $0x1] sm:$0x1] %v1247
      %v1249 = vld [vmem:[#allocation2 + $0x1] sm:$0x1]
      %v1250 = vmul.f32 %v1249, 0.001953125
      %v1251 = vmax.f32 %v1250, 0.0
      %v1252 = vld [vmem:[%s2] sm:$0x1]
      %v1253 = vadd.f32 %v1251, 1e-05
      %v1254 = vrsqrt.pop %v1253
      %v1255 = vmul.f32 %v1252, %v1254
      %v1256 = vld [vmem:[%s3] sm:$0x1]
      %v1257 = vmul.f32 %v722, %v1255
      %v1258 = vsub.f32 %v1256, %v1257
      %v1259 = vld [vmem:[#allocation8] sm:$0xff]
      %v1260 = vld [vmem:[#allocation8 + $0x8] sm:$0xff]
      %v1261 = vld [vmem:[#allocation8 + $0x10] sm:$0xff]
      %v1262 = vld [vmem:[#allocation8 + $0x18] sm:$0xff]
      %v1263 = vld [vmem:[#allocation8 + $0x20] sm:$0xff]
      %v1264 = vld [vmem:[#allocation8 + $0x28] sm:$0xff]
      %v1265 = vld [vmem:[#allocation8 + $0x30] sm:$0xff]
      %v1266 = vld [vmem:[#allocation8 + $0x38] sm:$0xff]
      %v1267 = vld [vmem:[#allocation8 + $0x40] sm:$0xff]
      %v1268 = vld [vmem:[#allocation8 + $0x48] sm:$0xff]
      %v1269 = vld [vmem:[#allocation8 + $0x50] sm:$0xff]
      %v1270 = vld [vmem:[#allocation8 + $0x58] sm:$0xff]
      %v1271 = vld [vmem:[#allocation8 + $0x60] sm:$0xff]
      %v1272 = vld [vmem:[#allocation8 + $0x68] sm:$0xff]
      %v1273 = vld [vmem:[#allocation8 + $0x70] sm:$0xff]
      %v1274 = vld [vmem:[#allocation8 + $0x78] sm:$0xff]
      %v1275 = vld [vmem:[#allocation8 + $0x80] sm:$0xff]
      %v1276 = vld [vmem:[#allocation8 + $0x88] sm:$0xff]
      %v1277 = vld [vmem:[#allocation8 + $0x90] sm:$0xff]
      %v1278 = vld [vmem:[#allocation8 + $0x98] sm:$0xff]
      %v1279 = vld [vmem:[#allocation8 + $0xa0] sm:$0xff]
      %v1280 = vld [vmem:[#allocation8 + $0xa8] sm:$0xff]
      %v1281 = vld [vmem:[#allocation8 + $0xb0] sm:$0xff]
      %v1282 = vld [vmem:[#allocation8 + $0xb8] sm:$0xff]
      %v1283 = vld [vmem:[#allocation8 + $0xc0] sm:$0xff]
      %v1284 = vld [vmem:[#allocation8 + $0xc8] sm:$0xff]
      %v1285 = vld [vmem:[#allocation8 + $0xd0] sm:$0xff]
      %v1286 = vld [vmem:[#allocation8 + $0xd8] sm:$0xff]
      %v1287 = vld [vmem:[#allocation8 + $0xe0] sm:$0xff]
      %v1288 = vld [vmem:[#allocation8 + $0xe8] sm:$0xff]
      %v1289 = vld [vmem:[#allocation8 + $0xf0] sm:$0xff]
      %v1290 = vld [vmem:[#allocation8 + $0xf8] sm:$0xff]
      %v1291 = vld [vmem:[#allocation8 + $0x100] sm:$0xff]
      %v1292 = vld [vmem:[#allocation8 + $0x108] sm:$0xff]
      %v1293 = vld [vmem:[#allocation8 + $0x110] sm:$0xff]
      %v1294 = vld [vmem:[#allocation8 + $0x118] sm:$0xff]
      %v1295 = vld [vmem:[#allocation8 + $0x120] sm:$0xff]
      %v1296 = vld [vmem:[#allocation8 + $0x128] sm:$0xff]
      %v1297 = vld [vmem:[#allocation8 + $0x130] sm:$0xff]
      %v1298 = vld [vmem:[#allocation8 + $0x138] sm:$0xff]
      %v1299 = vld [vmem:[#allocation8 + $0x140] sm:$0xff]
      %v1300 = vld [vmem:[#allocation8 + $0x148] sm:$0xff]
      %v1301 = vld [vmem:[#allocation8 + $0x150] sm:$0xff]
      %v1302 = vld [vmem:[#allocation8 + $0x158] sm:$0xff]
      %v1303 = vld [vmem:[#allocation8 + $0x160] sm:$0xff]
      %v1304 = vld [vmem:[#allocation8 + $0x168] sm:$0xff]
      %v1305 = vld [vmem:[#allocation8 + $0x170] sm:$0xff]
      %v1306 = vld [vmem:[#allocation8 + $0x178] sm:$0xff]
      %v1307 = vld [vmem:[#allocation8 + $0x180] sm:$0xff]
      %v1308 = vld [vmem:[#allocation8 + $0x188] sm:$0xff]
      %v1309 = vld [vmem:[#allocation8 + $0x190] sm:$0xff]
      %v1310 = vld [vmem:[#allocation8 + $0x198] sm:$0xff]
      %v1311 = vld [vmem:[#allocation8 + $0x1a0] sm:$0xff]
      %v1312 = vld [vmem:[#allocation8 + $0x1a8] sm:$0xff]
      %v1313 = vld [vmem:[#allocation8 + $0x1b0] sm:$0xff]
      %v1314 = vld [vmem:[#allocation8 + $0x1b8] sm:$0xff]
      %v1315 = vld [vmem:[#allocation8 + $0x1c0] sm:$0xff]
      %v1316 = vld [vmem:[#allocation8 + $0x1c8] sm:$0xff]
      %v1317 = vld [vmem:[#allocation8 + $0x1d0] sm:$0xff]
      %v1318 = vld [vmem:[#allocation8 + $0x1d8] sm:$0xff]
      %v1319 = vld [vmem:[#allocation8 + $0x1e0] sm:$0xff]
      %v1320 = vld [vmem:[#allocation8 + $0x1e8] sm:$0xff]
      %v1321 = vld [vmem:[#allocation8 + $0x1f0] sm:$0xff]
      %v1322 = vld [vmem:[#allocation8 + $0x1f8] sm:$0xff]
      %v1324 = vlaneseq
      %v1325 = vshrl.u32 %v1324, 7
      %v1326 = vsub.s32 0, %v1325
      %v1327 = vrot.slane %v1255, %v1326
      %v1329 = vmul.f32 %v1259, %v1327
      %v1330 = vmul.f32 %v1260, %v1327
      %v1331 = vmul.f32 %v1261, %v1327
      %v1332 = vmul.f32 %v1262, %v1327
      %v1333 = vmul.f32 %v1263, %v1327
      %v1334 = vmul.f32 %v1264, %v1327
      %v1335 = vmul.f32 %v1265, %v1327
      %v1336 = vmul.f32 %v1266, %v1327
      %v1337 = vmul.f32 %v1267, %v1327
      %v1338 = vmul.f32 %v1268, %v1327
      %v1339 = vmul.f32 %v1269, %v1327
      %v1340 = vmul.f32 %v1270, %v1327
      %v1341 = vmul.f32 %v1271, %v1327
      %v1342 = vmul.f32 %v1272, %v1327
      %v1343 = vmul.f32 %v1273, %v1327
      %v1344 = vmul.f32 %v1274, %v1327
      %v1345 = vmul.f32 %v1275, %v1327
      %v1346 = vmul.f32 %v1276, %v1327
      %v1347 = vmul.f32 %v1277, %v1327
      %v1348 = vmul.f32 %v1278, %v1327
      %v1349 = vmul.f32 %v1279, %v1327
      %v1350 = vmul.f32 %v1280, %v1327
      %v1351 = vmul.f32 %v1281, %v1327
      %v1352 = vmul.f32 %v1282, %v1327
      %v1353 = vmul.f32 %v1283, %v1327
      %v1354 = vmul.f32 %v1284, %v1327
      %v1355 = vmul.f32 %v1285, %v1327
      %v1356 = vmul.f32 %v1286, %v1327
      %v1357 = vmul.f32 %v1287, %v1327
      %v1358 = vmul.f32 %v1288, %v1327
      %v1359 = vmul.f32 %v1289, %v1327
      %v1360 = vmul.f32 %v1290, %v1327
      %v1361 = vmul.f32 %v1291, %v1327
      %v1362 = vmul.f32 %v1292, %v1327
      %v1363 = vmul.f32 %v1293, %v1327
      %v1364 = vmul.f32 %v1294, %v1327
      %v1365 = vmul.f32 %v1295, %v1327
      %v1366 = vmul.f32 %v1296, %v1327
      %v1367 = vmul.f32 %v1297, %v1327
      %v1368 = vmul.f32 %v1298, %v1327
      %v1369 = vmul.f32 %v1299, %v1327
      %v1370 = vmul.f32 %v1300, %v1327
      %v1371 = vmul.f32 %v1301, %v1327
      %v1372 = vmul.f32 %v1302, %v1327
      %v1373 = vmul.f32 %v1303, %v1327
      %v1374 = vmul.f32 %v1304, %v1327
      %v1375 = vmul.f32 %v1305, %v1327
      %v1376 = vmul.f32 %v1306, %v1327
      %v1377 = vmul.f32 %v1307, %v1327
      %v1378 = vmul.f32 %v1308, %v1327
      %v1379 = vmul.f32 %v1309, %v1327
      %v1380 = vmul.f32 %v1310, %v1327
      %v1381 = vmul.f32 %v1311, %v1327
      %v1382 = vmul.f32 %v1312, %v1327
      %v1383 = vmul.f32 %v1313, %v1327
      %v1384 = vmul.f32 %v1314, %v1327
      %v1385 = vmul.f32 %v1315, %v1327
      %v1386 = vmul.f32 %v1316, %v1327
      %v1387 = vmul.f32 %v1317, %v1327
      %v1388 = vmul.f32 %v1318, %v1327
      %v1389 = vmul.f32 %v1319, %v1327
      %v1390 = vmul.f32 %v1320, %v1327
      %v1391 = vmul.f32 %v1321, %v1327
      %v1392 = vmul.f32 %v1322, %v1327
      %v1394 = vlaneseq
      %v1395 = vshrl.u32 %v1394, 7
      %v1396 = vsub.s32 0, %v1395
      %v1397 = vrot.slane %v1258, %v1396
      %v1399 = vadd.f32 %v1329, %v1397
      %v1400 = vadd.f32 %v1330, %v1397
      %v1401 = vadd.f32 %v1331, %v1397
      %v1402 = vadd.f32 %v1332, %v1397
      %v1403 = vadd.f32 %v1333, %v1397
      %v1404 = vadd.f32 %v1334, %v1397
      %v1405 = vadd.f32 %v1335, %v1397
      %v1406 = vadd.f32 %v1336, %v1397
      %v1407 = vadd.f32 %v1337, %v1397
      %v1408 = vadd.f32 %v1338, %v1397
      %v1409 = vadd.f32 %v1339, %v1397
      %v1410 = vadd.f32 %v1340, %v1397
      %v1411 = vadd.f32 %v1341, %v1397
      %v1412 = vadd.f32 %v1342, %v1397
      %v1413 = vadd.f32 %v1343, %v1397
      %v1414 = vadd.f32 %v1344, %v1397
      %v1415 = vadd.f32 %v1345, %v1397
      %v1416 = vadd.f32 %v1346, %v1397
      %v1417 = vadd.f32 %v1347, %v1397
      %v1418 = vadd.f32 %v1348, %v1397
      %v1419 = vadd.f32 %v1349, %v1397
      %v1420 = vadd.f32 %v1350, %v1397
      %v1421 = vadd.f32 %v1351, %v1397
      %v1422 = vadd.f32 %v1352, %v1397
      %v1423 = vadd.f32 %v1353, %v1397
      %v1424 = vadd.f32 %v1354, %v1397
      %v1425 = vadd.f32 %v1355, %v1397
      %v1426 = vadd.f32 %v1356, %v1397
      %v1427 = vadd.f32 %v1357, %v1397
      %v1428 = vadd.f32 %v1358, %v1397
      %v1429 = vadd.f32 %v1359, %v1397
      %v1430 = vadd.f32 %v1360, %v1397
      %v1431 = vadd.f32 %v1361, %v1397
      %v1432 = vadd.f32 %v1362, %v1397
      %v1433 = vadd.f32 %v1363, %v1397
      %v1434 = vadd.f32 %v1364, %v1397
      %v1435 = vadd.f32 %v1365, %v1397
      %v1436 = vadd.f32 %v1366, %v1397
      %v1437 = vadd.f32 %v1367, %v1397
      %v1438 = vadd.f32 %v1368, %v1397
      %v1439 = vadd.f32 %v1369, %v1397
      %v1440 = vadd.f32 %v1370, %v1397
      %v1441 = vadd.f32 %v1371, %v1397
      %v1442 = vadd.f32 %v1372, %v1397
      %v1443 = vadd.f32 %v1373, %v1397
      %v1444 = vadd.f32 %v1374, %v1397
      %v1445 = vadd.f32 %v1375, %v1397
      %v1446 = vadd.f32 %v1376, %v1397
      %v1447 = vadd.f32 %v1377, %v1397
      %v1448 = vadd.f32 %v1378, %v1397
      %v1449 = vadd.f32 %v1379, %v1397
      %v1450 = vadd.f32 %v1380, %v1397
      %v1451 = vadd.f32 %v1381, %v1397
      %v1452 = vadd.f32 %v1382, %v1397
      %v1453 = vadd.f32 %v1383, %v1397
      %v1454 = vadd.f32 %v1384, %v1397
      %v1455 = vadd.f32 %v1385, %v1397
      %v1456 = vadd.f32 %v1386, %v1397
      %v1457 = vadd.f32 %v1387, %v1397
      %v1458 = vadd.f32 %v1388, %v1397
      %v1459 = vadd.f32 %v1389, %v1397
      %v1460 = vadd.f32 %v1390, %v1397
      %v1461 = vadd.f32 %v1391, %v1397
      %v1462 = vadd.f32 %v1392, %v1397
      %1463 = vst [vmem:[#allocation8] sm:$0xff] %v1399
      %1464 = vst [vmem:[#allocation8 + $0x8] sm:$0xff] %v1400
      %1465 = vst [vmem:[#allocation8 + $0x10] sm:$0xff] %v1401
      %1466 = vst [vmem:[#allocation8 + $0x18] sm:$0xff] %v1402
      %1467 = vst [vmem:[#allocation8 + $0x20] sm:$0xff] %v1403
      %1468 = vst [vmem:[#allocation8 + $0x28] sm:$0xff] %v1404
      %1469 = vst [vmem:[#allocation8 + $0x30] sm:$0xff] %v1405
      %1470 = vst [vmem:[#allocation8 + $0x38] sm:$0xff] %v1406
      %1471 = vst [vmem:[#allocation8 + $0x40] sm:$0xff] %v1407
      %1472 = vst [vmem:[#allocation8 + $0x48] sm:$0xff] %v1408
      %1473 = vst [vmem:[#allocation8 + $0x50] sm:$0xff] %v1409
      %1474 = vst [vmem:[#allocation8 + $0x58] sm:$0xff] %v1410
      %1475 = vst [vmem:[#allocation8 + $0x60] sm:$0xff] %v1411
      %1476 = vst [vmem:[#allocation8 + $0x68] sm:$0xff] %v1412
      %1477 = vst [vmem:[#allocation8 + $0x70] sm:$0xff] %v1413
      %1478 = vst [vmem:[#allocation8 + $0x78] sm:$0xff] %v1414
      %1479 = vst [vmem:[#allocation8 + $0x80] sm:$0xff] %v1415
      %1480 = vst [vmem:[#allocation8 + $0x88] sm:$0xff] %v1416
      %1481 = vst [vmem:[#allocation8 + $0x90] sm:$0xff] %v1417
      %1482 = vst [vmem:[#allocation8 + $0x98] sm:$0xff] %v1418
      %1483 = vst [vmem:[#allocation8 + $0xa0] sm:$0xff] %v1419
      %1484 = vst [vmem:[#allocation8 + $0xa8] sm:$0xff] %v1420
      %1485 = vst [vmem:[#allocation8 + $0xb0] sm:$0xff] %v1421
      %1486 = vst [vmem:[#allocation8 + $0xb8] sm:$0xff] %v1422
      %1487 = vst [vmem:[#allocation8 + $0xc0] sm:$0xff] %v1423
      %1488 = vst [vmem:[#allocation8 + $0xc8] sm:$0xff] %v1424
      %1489 = vst [vmem:[#allocation8 + $0xd0] sm:$0xff] %v1425
      %1490 = vst [vmem:[#allocation8 + $0xd8] sm:$0xff] %v1426
      %1491 = vst [vmem:[#allocation8 + $0xe0] sm:$0xff] %v1427
      %1492 = vst [vmem:[#allocation8 + $0xe8] sm:$0xff] %v1428
      %1493 = vst [vmem:[#allocation8 + $0xf0] sm:$0xff] %v1429
      %1494 = vst [vmem:[#allocation8 + $0xf8] sm:$0xff] %v1430
      %1495 = vst [vmem:[#allocation8 + $0x100] sm:$0xff] %v1431
      %1496 = vst [vmem:[#allocation8 + $0x108] sm:$0xff] %v1432
      %1497 = vst [vmem:[#allocation8 + $0x110] sm:$0xff] %v1433
      %1498 = vst [vmem:[#allocation8 + $0x118] sm:$0xff] %v1434
      %1499 = vst [vmem:[#allocation8 + $0x120] sm:$0xff] %v1435
      %1500 = vst [vmem:[#allocation8 + $0x128] sm:$0xff] %v1436
      %1501 = vst [vmem:[#allocation8 + $0x130] sm:$0xff] %v1437
      %1502 = vst [vmem:[#allocation8 + $0x138] sm:$0xff] %v1438
      %1503 = vst [vmem:[#allocation8 + $0x140] sm:$0xff] %v1439
      %1504 = vst [vmem:[#allocation8 + $0x148] sm:$0xff] %v1440
      %1505 = vst [vmem:[#allocation8 + $0x150] sm:$0xff] %v1441
      %1506 = vst [vmem:[#allocation8 + $0x158] sm:$0xff] %v1442
      %1507 = vst [vmem:[#allocation8 + $0x160] sm:$0xff] %v1443
      %1508 = vst [vmem:[#allocation8 + $0x168] sm:$0xff] %v1444
      %1509 = vst [vmem:[#allocation8 + $0x170] sm:$0xff] %v1445
      %1510 = vst [vmem:[#allocation8 + $0x178] sm:$0xff] %v1446
      %1511 = vst [vmem:[#allocation8 + $0x180] sm:$0xff] %v1447
      %1512 = vst [vmem:[#allocation8 + $0x188] sm:$0xff] %v1448
      %1513 = vst [vmem:[#allocation8 + $0x190] sm:$0xff] %v1449
      %1514 = vst [vmem:[#allocation8 + $0x198] sm:$0xff] %v1450
      %1515 = vst [vmem:[#allocation8 + $0x1a0] sm:$0xff] %v1451
      %1516 = vst [vmem:[#allocation8 + $0x1a8] sm:$0xff] %v1452
      %1517 = vst [vmem:[#allocation8 + $0x1b0] sm:$0xff] %v1453
      %1518 = vst [vmem:[#allocation8 + $0x1b8] sm:$0xff] %v1454
      %1519 = vst [vmem:[#allocation8 + $0x1c0] sm:$0xff] %v1455
      %1520 = vst [vmem:[#allocation8 + $0x1c8] sm:$0xff] %v1456
      %1521 = vst [vmem:[#allocation8 + $0x1d0] sm:$0xff] %v1457
      %1522 = vst [vmem:[#allocation8 + $0x1d8] sm:$0xff] %v1458
      %1523 = vst [vmem:[#allocation8 + $0x1e0] sm:$0xff] %v1459
      %1524 = vst [vmem:[#allocation8 + $0x1e8] sm:$0xff] %v1460
      %1525 = vst [vmem:[#allocation8 + $0x1f0] sm:$0xff] %v1461
      %1526 = vst [vmem:[#allocation8 + $0x1f8] sm:$0xff] %v1462
    $region33: #{tpu_custom_call.1} parent=1 // pred_fallthru
      _
    // Predicated region
    $region34: #{tpu_custom_call.1} parent=1 // pred_check
      _
    $region35: #{tpu_custom_call.1} parent=1 // pred_check_branch
      %1528 = sbr.rel (0) target = $region37
    $region36: #{tpu_custom_call.1} parent=1 // pred_region
      %s1530 = ssub.s32 8192, 8192
      %1531 = vsyncadd [#allocation5], %s1530
      %s1532 = sshll.u32 [#allocation8], 4
      %s1533 = int_to_ptr.vmem [resolvable:$true] %s1532
      %1538 = dma.vmem_to_hbm [thread:$0]  %s1533, 8192, %s4, [#allocation5], 128, 128, 8
    $region37: #{tpu_custom_call.1} parent=1 // pred_fallthru
      _
    // Predicated region
    $region38: #{tpu_custom_call.1} parent=1 // pred_check
      _
    $region39: #{tpu_custom_call.1} parent=1 // pred_check_branch
      %1540 = sbr.rel (0) target = $region41
    $region40: #{tpu_custom_call.1} parent=1 // pred_region
      %1541 = dma.done [#allocation5], 8192
    $region41: #{tpu_custom_call.1} parent=1 // pred_fallthru
      _
    %1542 = vsyncpa [#allocation4], 1
    %1543 = vsyncpa [#allocation7], 1
    %1544 = vsyncpa [#allocation5], 1

</llo_original>
